<compile_context>
chip_gen: v7x
topology: tpu7x:2x2x1
jax: 0.10.0
libtpu: 0.0.40
codegen_flags: <defaults>
</compile_context>

<pallas_src>
import functools

import jax
import jax.numpy as jnp
from jax import lax
from jax.experimental import pallas as pl
from jax.experimental.pallas import tpu as pltpu

NUM_HEADS_PAD = 8  # pad the 2 heads (seg, cont) to a full sublane group


def adapter_kernel(x_ref, w_ref, shift_ref, wh_ref, bh_ref, out_ref, *, wp, tm):
    # x_ref    : (1, tm + halo_pad, Cin)  bf16  flattened padded-image rows (+ halo)
    # w_ref    : (9, Cin, Cm_pad)         bf16  BN-scale-folded 3x3 conv taps
    # shift_ref: (1, Cm_pad)              f32   folded BN shift (includes conv bias)
    # wh_ref   : (8, Cm_pad)              bf16  rows 0/1 = o0/o1 1x1 weights, rest 0
    # bh_ref   : (8, 1)                   f32   rows 0/1 = o0/o1 biases, rest 0
    # out_ref  : (8, tm)                  f32   lane-dense head outputs for this tile
    #
    # 3x3 'same' conv as 9 shifted GEMMs over the flat padded-width image:
    # output flat row j consumes input flat rows j + dy*(W+2) + dx.
    acc = jnp.dot(x_ref[0, 0:tm, :], w_ref[0], preferred_element_type=jnp.float32)
    for t in range(1, 9):
        off = (t // 3) * wp + (t % 3)            # static tap offset
        acc += jnp.dot(x_ref[0, off:off + tm, :], w_ref[t],
                       preferred_element_type=jnp.float32)
    # BatchNorm (eval mode; scale already folded into the conv weights) + ReLU.
    feat = jnp.maximum(acc + shift_ref[...], 0.0)
    # Both 1x1-conv heads as one NT GEMM: (8, Cm) x (tm, Cm)^T -> (8, tm).
    heads = lax.dot_general(
        wh_ref[...], feat.astype(jnp.bfloat16),
        dimension_numbers=(((1,), (1,)), ((), ())),
        preferred_element_type=jnp.float32)
    out_ref[...] = heads + bh_ref[...]


def adapter_forward(x_nchw, p, *, tm=None):
    """x_nchw: (B, Cin, H, W) float32. Returns dict of NCHW outputs like the PyTorch module."""
    B, Cin, H, W = x_nchw.shape
    Cm = p["coda_conv_w"].shape[0]
    hp, wp = H + 2, W + 2
    m_total = B * hp * wp               # batch folded into the GEMM M dimension
    halo = 2 * wp + 2                   # max flat-row tap offset
    halo_pad = ((halo + 7) // 8) * 8

    if tm is None:                      # M tile: multiple of 128 (lane-dense output)
        if m_total >= 16384:
            tm = 1024
        elif m_total >= 4096:
            tm = 512
        else:
            tm = 128
    nt = -(-m_total // tm)
    m_pad = nt * tm
    cm_pad = ((Cm + 127) // 128) * 128  # pad intermediate channels to full lanes

    # ---- glue: NHWC + 'same' padding, flatten, build halo'd row tiles ----
    x = jnp.transpose(x_nchw, (0, 2, 3, 1)).astype(jnp.bfloat16)       # NHWC, bf16
    xp = jnp.pad(x, ((0, 0), (1, 1), (1, 1), (0, 0)))                  # (B,hp,wp,Cin)
    xflat = xp.reshape(m_total, Cin)
    xflat = jnp.pad(xflat, ((0, m_pad + halo_pad - m_total), (0, 0)))
    starts = jnp.arange(nt) * tm
    xtiles = jax.vmap(
        lambda s: lax.dynamic_slice(xflat, (s, 0), (tm + halo_pad, Cin)))(starts)

    # ---- glue: fold parameters into GEMM operands ----
    eps = 1e-5
    scale = p["bn_gamma"] / jnp.sqrt(p["bn_var"] + eps)                         # (Cm,)
    shift = (p["coda_conv_b"] - p["bn_mean"]) * scale + p["bn_beta"]            # (Cm,)
    w = jnp.transpose(p["coda_conv_w"] * scale[:, None, None, None], (2, 3, 1, 0))
    w = w.reshape(9, Cin, Cm)                                                   # taps (dy,dx)
    w = jnp.pad(w, ((0, 0), (0, 0), (0, cm_pad - Cm))).astype(jnp.bfloat16)
    shift_p = jnp.pad(shift, (0, cm_pad - Cm)).reshape(1, cm_pad).astype(jnp.float32)
    wh = jnp.stack([p["o0_w"][0, :, 0, 0], p["o1_w"][0, :, 0, 0]], axis=0)      # (2, Cm)
    wh = jnp.pad(wh, ((0, NUM_HEADS_PAD - 2), (0, cm_pad - Cm))).astype(jnp.bfloat16)
    bh = jnp.stack([p["o0_b"][0], p["o1_b"][0]])
    bh = jnp.pad(bh, (0, NUM_HEADS_PAD - 2)).reshape(NUM_HEADS_PAD, 1).astype(jnp.float32)

    kernel = functools.partial(adapter_kernel, wp=wp, tm=tm)
    out_flat = pl.pallas_call(
        kernel,
        out_shape=jax.ShapeDtypeStruct((NUM_HEADS_PAD, m_pad), jnp.float32),
        grid=(nt,),
        in_specs=[
            pl.BlockSpec((1, tm + halo_pad, Cin), lambda i: (i, 0, 0)),
            pl.BlockSpec((9, Cin, cm_pad), lambda i: (0, 0, 0)),
            pl.BlockSpec((1, cm_pad), lambda i: (0, 0)),
            pl.BlockSpec((NUM_HEADS_PAD, cm_pad), lambda i: (0, 0)),
            pl.BlockSpec((NUM_HEADS_PAD, 1), lambda i: (0, 0)),
        ],
        out_specs=pl.BlockSpec((NUM_HEADS_PAD, tm), lambda i: (0, i)),
        compiler_params=pltpu.CompilerParams(
            dimension_semantics=("parallel",),
            vmem_limit_bytes=64 * 1024 * 1024,
        ),
    )(xtiles, w, shift_p, wh, bh)

    # Flat output row j (within batch b) = y*(W+2) + x; valid pixels are y<H, x<W.
    out = out_flat[:2, :m_total].reshape(2, B, hp, wp)[:, :, :H, :W]    # (2, B, H, W)
    seg = out[0][:, None]
    cont = out[1][:, None]
    return {"seg_mask": seg, "cont_mask": cont}


def adapter_reference(x_nchw, p):
    """Plain-JAX f32 reference mimicking the PyTorch module (BN in eval mode)."""
    dn = ("NCHW", "OIHW", "NCHW")
    z = lax.conv_general_dilated(x_nchw, p["coda_conv_w"], (1, 1), "SAME", dimension_numbers=dn)
    z = z + p["coda_conv_b"][None, :, None, None]
    z = (z - p["bn_mean"][None, :, None, None]) * (
        p["bn_gamma"][None, :, None, None] / jnp.sqrt(p["bn_var"][None, :, None, None] + 1e-5)
    ) + p["bn_beta"][None, :, None, None]
    z = jnp.maximum(z, 0.0)
    seg = lax.conv_general_dilated(z, p["o0_w"], (1, 1), "VALID", dimension_numbers=dn) \
        + p["o0_b"][None, :, None, None]
    cont = lax.conv_general_dilated(z, p["o1_w"], (1, 1), "VALID", dimension_numbers=dn) \
        + p["o1_b"][None, :, None, None]
    return {"seg_mask": seg, "cont_mask": cont}


def init_params(key, in_channels, inter_channels):
    ks = jax.random.split(key, 8)
    Cin, Cm = in_channels, inter_channels
    return {
        # ConvBNReLU: 3x3 conv (OIHW, like PyTorch) + BatchNorm2d params (eval mode)
        "coda_conv_w": 0.1 * jax.random.normal(ks[0], (Cm, Cin, 3, 3), jnp.float32),
        "coda_conv_b": 0.1 * jax.random.normal(ks[1], (Cm,), jnp.float32),
        "bn_gamma": 1.0 + 0.1 * jax.random.normal(ks[2], (Cm,), jnp.float32),
        "bn_beta": 0.1 * jax.random.normal(ks[3], (Cm,), jnp.float32),
        "bn_mean": 0.1 * jax.random.normal(ks[4], (Cm,), jnp.float32),
        "bn_var": jnp.abs(jax.random.normal(ks[5], (Cm,), jnp.float32)) + 0.5,
        # mode='seg': two 1x1 convs with 1 output channel each
        "o0_w": 0.1 * jax.random.normal(ks[6], (1, Cm, 1, 1), jnp.float32),
        "o0_b": jnp.array([0.01], jnp.float32),
        "o1_w": 0.1 * jax.random.normal(ks[7], (1, Cm, 1, 1), jnp.float32),
        "o1_b": jnp.array([-0.01], jnp.float32),
    }


if __name__ == "__main__":
    key = jax.random.PRNGKey(0)
    kx, kp = jax.random.split(key)
    B, Cin, H, W = 2, 4, 16, 16
    Cm = 32  # inter_channels
    x = jax.random.normal(kx, (B, Cin, H, W), jnp.float32)
    params = init_params(kp, Cin, Cm)

    out = adapter_forward(x, params)
    jax.block_until_ready(out)

    ref = adapter_reference(x, params)
    assert out["seg_mask"].shape == (B, 1, H, W)
    assert out["cont_mask"].shape == (B, 1, H, W)
    # bf16 MXU operands (f32 accumulation) -> looser tolerance than a pure-f32 path.
    assert jnp.allclose(out["seg_mask"], ref["seg_mask"], atol=5e-2, rtol=5e-2)
    assert jnp.allclose(out["cont_mask"], ref["cont_mask"], atol=5e-2, rtol=5e-2)
    print("KERNEL_OK")
</pallas_src>

<mosaic_0001>
module attributes {stable_mosaic.version = 11 : i64} {
  func.func @adapter_kernel(%arg0: i32, %arg1: memref<1x168x4xbf16, #tpu.memory_space<vmem>>, %arg2: memref<9x4x128xbf16, #tpu.memory_space<vmem>>, %arg3: memref<1x128xf32, #tpu.memory_space<vmem>>, %arg4: memref<8x128xbf16, #tpu.memory_space<vmem>>, %arg5: memref<8x1xf32, #tpu.memory_space<vmem>>, %arg6: memref<8x128xf32, #tpu.memory_space<vmem>>) attributes {dimension_semantics = [#tpu.dimension_semantics<parallel>], iteration_bounds = array<i64: 6>, scalar_prefetch = 0 : i64, scratch_operands = 0 : i64, tpu.core_type = #tpu.core_type<tc>, window_params = [{transform_indices = @transform_0, window_bounds = array<i64: 1, 168, 4>}, {pipeline_mode = #tpu.pipeline_mode<synchronous>, transform_indices = @transform_1, window_bounds = array<i64: 9, 4, 128>}, {pipeline_mode = #tpu.pipeline_mode<synchronous>, transform_indices = @transform_2, window_bounds = array<i64: 1, 128>}, {pipeline_mode = #tpu.pipeline_mode<synchronous>, transform_indices = @transform_3, window_bounds = array<i64: 8, 128>}, {pipeline_mode = #tpu.pipeline_mode<synchronous>, transform_indices = @transform_4, window_bounds = array<i64: 8, 1>}, {transform_indices = @transform_5, window_bounds = array<i64: 8, 128>}]} {
    %c0 = arith.constant 0 : index
    %c0_0 = arith.constant 0 : index
    %c0_1 = arith.constant 0 : index
    %0 = vector.load %arg1[%c0, %c0_0, %c0_1] : memref<1x168x4xbf16, #tpu.memory_space<vmem>>, vector<1x128x4xbf16>
    %1 = vector.shape_cast %0 : vector<1x128x4xbf16> to vector<128x4xbf16>
    %c0_2 = arith.constant 0 : index
    %c0_3 = arith.constant 0 : index
    %c0_4 = arith.constant 0 : index
    %2 = vector.load %arg2[%c0_2, %c0_3, %c0_4] : memref<9x4x128xbf16, #tpu.memory_space<vmem>>, vector<1x4x128xbf16>
    %3 = vector.shape_cast %2 : vector<1x4x128xbf16> to vector<4x128xbf16>
    %cst = arith.constant dense<0.000000e+00> : vector<128x128xf32>
    %4 = tpu.matmul %1, %3, %cst {dimension_numbers = #tpu.dot_dimension_numbers<[1], [0], [0], [1], [0, 0, 1, 1], [], []>} : vector<128x4xbf16>, vector<4x128xbf16>, vector<128x128xf32> -> vector<128x128xf32>
    %c0_5 = arith.constant 0 : index
    %c1 = arith.constant 1 : index
    %c0_6 = arith.constant 0 : index
    %5 = vector.load %arg1[%c0_5, %c1, %c0_6] : memref<1x168x4xbf16, #tpu.memory_space<vmem>>, vector<1x128x4xbf16>
    %6 = vector.shape_cast %5 : vector<1x128x4xbf16> to vector<128x4xbf16>
    %c1_7 = arith.constant 1 : index
    %c0_8 = arith.constant 0 : index
    %c0_9 = arith.constant 0 : index
    %7 = vector.load %arg2[%c1_7, %c0_8, %c0_9] : memref<9x4x128xbf16, #tpu.memory_space<vmem>>, vector<1x4x128xbf16>
    %8 = vector.shape_cast %7 : vector<1x4x128xbf16> to vector<4x128xbf16>
    %cst_10 = arith.constant dense<0.000000e+00> : vector<128x128xf32>
    %9 = tpu.matmul %6, %8, %cst_10 {dimension_numbers = #tpu.dot_dimension_numbers<[1], [0], [0], [1], [0, 0, 1, 1], [], []>} : vector<128x4xbf16>, vector<4x128xbf16>, vector<128x128xf32> -> vector<128x128xf32>
    %10 = arith.addf %4, %9 : vector<128x128xf32>
    %c0_11 = arith.constant 0 : index
    %c2 = arith.constant 2 : index
    %c0_12 = arith.constant 0 : index
    %11 = vector.load %arg1[%c0_11, %c2, %c0_12] : memref<1x168x4xbf16, #tpu.memory_space<vmem>>, vector<1x128x4xbf16>
    %12 = vector.shape_cast %11 : vector<1x128x4xbf16> to vector<128x4xbf16>
    %c2_13 = arith.constant 2 : index
    %c0_14 = arith.constant 0 : index
    %c0_15 = arith.constant 0 : index
    %13 = vector.load %arg2[%c2_13, %c0_14, %c0_15] : memref<9x4x128xbf16, #tpu.memory_space<vmem>>, vector<1x4x128xbf16>
    %14 = vector.shape_cast %13 : vector<1x4x128xbf16> to vector<4x128xbf16>
    %cst_16 = arith.constant dense<0.000000e+00> : vector<128x128xf32>
    %15 = tpu.matmul %12, %14, %cst_16 {dimension_numbers = #tpu.dot_dimension_numbers<[1], [0], [0], [1], [0, 0, 1, 1], [], []>} : vector<128x4xbf16>, vector<4x128xbf16>, vector<128x128xf32> -> vector<128x128xf32>
    %16 = arith.addf %10, %15 : vector<128x128xf32>
    %c0_17 = arith.constant 0 : index
    %c18 = arith.constant 18 : index
    %c0_18 = arith.constant 0 : index
    %17 = vector.load %arg1[%c0_17, %c18, %c0_18] : memref<1x168x4xbf16, #tpu.memory_space<vmem>>, vector<1x128x4xbf16>
    %18 = vector.shape_cast %17 : vector<1x128x4xbf16> to vector<128x4xbf16>
    %c3 = arith.constant 3 : index
    %c0_19 = arith.constant 0 : index
    %c0_20 = arith.constant 0 : index
    %19 = vector.load %arg2[%c3, %c0_19, %c0_20] : memref<9x4x128xbf16, #tpu.memory_space<vmem>>, vector<1x4x128xbf16>
    %20 = vector.shape_cast %19 : vector<1x4x128xbf16> to vector<4x128xbf16>
    %cst_21 = arith.constant dense<0.000000e+00> : vector<128x128xf32>
    %21 = tpu.matmul %18, %20, %cst_21 {dimension_numbers = #tpu.dot_dimension_numbers<[1], [0], [0], [1], [0, 0, 1, 1], [], []>} : vector<128x4xbf16>, vector<4x128xbf16>, vector<128x128xf32> -> vector<128x128xf32>
    %22 = arith.addf %16, %21 : vector<128x128xf32>
    %c0_22 = arith.constant 0 : index
    %c19 = arith.constant 19 : index
    %c0_23 = arith.constant 0 : index
    %23 = vector.load %arg1[%c0_22, %c19, %c0_23] : memref<1x168x4xbf16, #tpu.memory_space<vmem>>, vector<1x128x4xbf16>
    %24 = vector.shape_cast %23 : vector<1x128x4xbf16> to vector<128x4xbf16>
    %c4 = arith.constant 4 : index
    %c0_24 = arith.constant 0 : index
    %c0_25 = arith.constant 0 : index
    %25 = vector.load %arg2[%c4, %c0_24, %c0_25] : memref<9x4x128xbf16, #tpu.memory_space<vmem>>, vector<1x4x128xbf16>
    %26 = vector.shape_cast %25 : vector<1x4x128xbf16> to vector<4x128xbf16>
    %cst_26 = arith.constant dense<0.000000e+00> : vector<128x128xf32>
    %27 = tpu.matmul %24, %26, %cst_26 {dimension_numbers = #tpu.dot_dimension_numbers<[1], [0], [0], [1], [0, 0, 1, 1], [], []>} : vector<128x4xbf16>, vector<4x128xbf16>, vector<128x128xf32> -> vector<128x128xf32>
    %28 = arith.addf %22, %27 : vector<128x128xf32>
    %c0_27 = arith.constant 0 : index
    %c20 = arith.constant 20 : index
    %c0_28 = arith.constant 0 : index
    %29 = vector.load %arg1[%c0_27, %c20, %c0_28] : memref<1x168x4xbf16, #tpu.memory_space<vmem>>, vector<1x128x4xbf16>
    %30 = vector.shape_cast %29 : vector<1x128x4xbf16> to vector<128x4xbf16>
    %c5 = arith.constant 5 : index
    %c0_29 = arith.constant 0 : index
    %c0_30 = arith.constant 0 : index
    %31 = vector.load %arg2[%c5, %c0_29, %c0_30] : memref<9x4x128xbf16, #tpu.memory_space<vmem>>, vector<1x4x128xbf16>
    %32 = vector.shape_cast %31 : vector<1x4x128xbf16> to vector<4x128xbf16>
    %cst_31 = arith.constant dense<0.000000e+00> : vector<128x128xf32>
    %33 = tpu.matmul %30, %32, %cst_31 {dimension_numbers = #tpu.dot_dimension_numbers<[1], [0], [0], [1], [0, 0, 1, 1], [], []>} : vector<128x4xbf16>, vector<4x128xbf16>, vector<128x128xf32> -> vector<128x128xf32>
    %34 = arith.addf %28, %33 : vector<128x128xf32>
    %c0_32 = arith.constant 0 : index
    %c36 = arith.constant 36 : index
    %c0_33 = arith.constant 0 : index
    %35 = vector.load %arg1[%c0_32, %c36, %c0_33] : memref<1x168x4xbf16, #tpu.memory_space<vmem>>, vector<1x128x4xbf16>
    %36 = vector.shape_cast %35 : vector<1x128x4xbf16> to vector<128x4xbf16>
    %c6 = arith.constant 6 : index
    %c0_34 = arith.constant 0 : index
    %c0_35 = arith.constant 0 : index
    %37 = vector.load %arg2[%c6, %c0_34, %c0_35] : memref<9x4x128xbf16, #tpu.memory_space<vmem>>, vector<1x4x128xbf16>
    %38 = vector.shape_cast %37 : vector<1x4x128xbf16> to vector<4x128xbf16>
    %cst_36 = arith.constant dense<0.000000e+00> : vector<128x128xf32>
    %39 = tpu.matmul %36, %38, %cst_36 {dimension_numbers = #tpu.dot_dimension_numbers<[1], [0], [0], [1], [0, 0, 1, 1], [], []>} : vector<128x4xbf16>, vector<4x128xbf16>, vector<128x128xf32> -> vector<128x128xf32>
    %40 = arith.addf %34, %39 : vector<128x128xf32>
    %c0_37 = arith.constant 0 : index
    %c37 = arith.constant 37 : index
    %c0_38 = arith.constant 0 : index
    %41 = vector.load %arg1[%c0_37, %c37, %c0_38] : memref<1x168x4xbf16, #tpu.memory_space<vmem>>, vector<1x128x4xbf16>
    %42 = vector.shape_cast %41 : vector<1x128x4xbf16> to vector<128x4xbf16>
    %c7 = arith.constant 7 : index
    %c0_39 = arith.constant 0 : index
    %c0_40 = arith.constant 0 : index
    %43 = vector.load %arg2[%c7, %c0_39, %c0_40] : memref<9x4x128xbf16, #tpu.memory_space<vmem>>, vector<1x4x128xbf16>
    %44 = vector.shape_cast %43 : vector<1x4x128xbf16> to vector<4x128xbf16>
    %cst_41 = arith.constant dense<0.000000e+00> : vector<128x128xf32>
    %45 = tpu.matmul %42, %44, %cst_41 {dimension_numbers = #tpu.dot_dimension_numbers<[1], [0], [0], [1], [0, 0, 1, 1], [], []>} : vector<128x4xbf16>, vector<4x128xbf16>, vector<128x128xf32> -> vector<128x128xf32>
    %46 = arith.addf %40, %45 : vector<128x128xf32>
    %c0_42 = arith.constant 0 : index
    %c38 = arith.constant 38 : index
    %c0_43 = arith.constant 0 : index
    %47 = vector.load %arg1[%c0_42, %c38, %c0_43] : memref<1x168x4xbf16, #tpu.memory_space<vmem>>, vector<1x128x4xbf16>
    %48 = vector.shape_cast %47 : vector<1x128x4xbf16> to vector<128x4xbf16>
    %c8 = arith.constant 8 : index
    %c0_44 = arith.constant 0 : index
    %c0_45 = arith.constant 0 : index
    %49 = vector.load %arg2[%c8, %c0_44, %c0_45] : memref<9x4x128xbf16, #tpu.memory_space<vmem>>, vector<1x4x128xbf16>
    %50 = vector.shape_cast %49 : vector<1x4x128xbf16> to vector<4x128xbf16>
    %cst_46 = arith.constant dense<0.000000e+00> : vector<128x128xf32>
    %51 = tpu.matmul %48, %50, %cst_46 {dimension_numbers = #tpu.dot_dimension_numbers<[1], [0], [0], [1], [0, 0, 1, 1], [], []>} : vector<128x4xbf16>, vector<4x128xbf16>, vector<128x128xf32> -> vector<128x128xf32>
    %52 = arith.addf %46, %51 : vector<128x128xf32>
    %c0_47 = arith.constant 0 : index
    %c0_48 = arith.constant 0 : index
    %53 = vector.load %arg3[%c0_47, %c0_48] : memref<1x128xf32, #tpu.memory_space<vmem>>, vector<1x128xf32>
    %54 = vector.broadcast %53 : vector<1x128xf32> to vector<128x128xf32>
    %55 = arith.addf %52, %54 : vector<128x128xf32>
    %cst_49 = arith.constant 0.000000e+00 : f32
    %56 = vector.broadcast %cst_49 : f32 to vector<128x128xf32>
    %57 = arith.maximumf %55, %56 : vector<128x128xf32>
    %c0_50 = arith.constant 0 : index
    %c0_51 = arith.constant 0 : index
    %58 = vector.load %arg4[%c0_50, %c0_51] : memref<8x128xbf16, #tpu.memory_space<vmem>>, vector<8x128xbf16>
    %59 = arith.truncf %57 : vector<128x128xf32> to vector<128x128xbf16>
    %cst_52 = arith.constant dense<0.000000e+00> : vector<8x128xf32>
    %60 = tpu.matmul %58, %59, %cst_52 {dimension_numbers = #tpu.dot_dimension_numbers<[1], [1], [0], [0], [0, 0, 1, 0], [], []>} : vector<8x128xbf16>, vector<128x128xbf16>, vector<8x128xf32> -> vector<8x128xf32>
    %c0_53 = arith.constant 0 : index
    %c0_54 = arith.constant 0 : index
    %61 = vector.load %arg5[%c0_53, %c0_54] : memref<8x1xf32, #tpu.memory_space<vmem>>, vector<8x1xf32>
    %62 = vector.broadcast %61 : vector<8x1xf32> to vector<8x128xf32>
    %63 = arith.addf %60, %62 : vector<8x128xf32>
    %c0_55 = arith.constant 0 : index
    %c0_56 = arith.constant 0 : index
    %64 = vector.load %arg6[%c0_55, %c0_56] : memref<8x128xf32, #tpu.memory_space<vmem>>, vector<8x128xf32>
    tpu.vector_store %arg6[%c0_55, %c0_56], %63 {strides = array<i32>} : memref<8x128xf32, #tpu.memory_space<vmem>>, vector<8x128xf32>,
    return
  }
  func.func @transform_0(%arg0: i32) -> (i32, i32, i32) {
    %c0_i32 = arith.constant 0 : i32
    %c0_i32_0 = arith.constant 0 : i32
    %c0_i32_1 = arith.constant 0 : i32
    return %arg0, %c0_i32, %c0_i32_0 : i32, i32, i32
  }
  func.func @transform_1(%arg0: i32) -> (i32, i32, i32) {
    %c0_i32 = arith.constant 0 : i32
    %c0_i32_0 = arith.constant 0 : i32
    %c0_i32_1 = arith.constant 0 : i32
    %c0_i32_2 = arith.constant 0 : i32
    return %c0_i32, %c0_i32_0, %c0_i32_1 : i32, i32, i32
  }
  func.func @transform_2(%arg0: i32) -> (i32, i32) {
    %c0_i32 = arith.constant 0 : i32
    %c0_i32_0 = arith.constant 0 : i32
    %c0_i32_1 = arith.constant 0 : i32
    return %c0_i32, %c0_i32_0 : i32, i32
  }
  func.func @transform_3(%arg0: i32) -> (i32, i32) {
    %c0_i32 = arith.constant 0 : i32
    %c0_i32_0 = arith.constant 0 : i32
    %c0_i32_1 = arith.constant 0 : i32
    return %c0_i32, %c0_i32_0 : i32, i32
  }
  func.func @transform_4(%arg0: i32) -> (i32, i32) {
    %c0_i32 = arith.constant 0 : i32
    %c0_i32_0 = arith.constant 0 : i32
    %c0_i32_1 = arith.constant 0 : i32
    return %c0_i32, %c0_i32_0 : i32, i32
  }
  func.func @transform_5(%arg0: i32) -> (i32, i32) {
    %c0_i32 = arith.constant 0 : i32
    %c0_i32_0 = arith.constant 0 : i32
    return %c0_i32, %arg0 : i32, i32
  }
}

</mosaic_0001>

<llo_original>
// kernel: tpu_custom_call.1
$region0: #{tpu_custom_call.1}
  #allocation0 [shape = 'u32[]', space=smem, size = 0x4, offset = 0x4, fixed_abs, tag = 'smem constant byte address 0x4 - core index']
  #allocation1 [shape = 'u32[144,128]{1,0:T(1,128)}', space=vmem, size = 0x12000, scoped, tag = 'internal scratch']
  %s0 = inlined_call_operand.hbm [shape: bf16[6,168,4], index: 0, kind: input, shape index: {}]
  %s1 = inlined_call_operand.hbm [shape: bf16[9,4,128], index: 1, kind: input, shape index: {}]
  %s2 = inlined_call_operand.hbm [shape: f32[1,128], index: 2, kind: input, shape index: {}]
  %s3 = inlined_call_operand.hbm [shape: bf16[8,128], index: 3, kind: input, shape index: {}]
  %s4 = inlined_call_operand.hbm [shape: f32[8,1], index: 4, kind: input, shape index: {}]
  %s5 = inlined_call_operand.hbm [shape: f32[8,768], index: 5, kind: output, shape index: {}]
  %s6 = sld [smem:[#allocation0]]
  $region73: #{tpu_custom_call.1} parent=0
    _
  %s8 = ssub.s32 1, %s6
  %s9 = scalar_select 0, %s8, %s6
  $region1: #{tpu_custom_call.1} parent=0
    #allocation2 [shape = 'u8[86016]{0}', space=vmem, size = 0x15000, scoped, tag = 'input window, operand 0']
    #allocation3 [shape = 's32[2]{0}', space=sflag, size = 0x8, scoped, tag = 'scoped memory for tpu_custom_call.1']
    #allocation4 [shape = 's32[2]{0}', space=sflag, size = 0x8, scoped, tag = 'scoped memory for tpu_custom_call.1']
    #allocation5 [shape = 'u8[9216]{0}', space=vmem, size = 0x2400, scoped, tag = 'input window, operand 1, single buffered']
    #allocation6 [shape = 's32[1]{0}', space=sflag, size = 0x4, scoped, tag = 'scoped memory for tpu_custom_call.1']
    #allocation7 [shape = 'u8[512]{0}', space=vmem, size = 0x400, scoped, tag = 'input window, operand 2, single buffered']
    #allocation8 [shape = 'u8[2048]{0}', space=vmem, size = 0x800, scoped, tag = 'input window, operand 3, single buffered']
    #allocation9 [shape = 's32[1]{0}', space=sflag, size = 0x4, scoped, tag = 'scoped memory for tpu_custom_call.1']
    #allocation10 [shape = 'u8[4096]{0}', space=vmem, size = 0x1000, scoped, tag = 'input window, operand 4, single buffered']
    #allocation11 [shape = 'u8[8192]{0}', space=vmem, size = 0x2000, scoped, tag = 'output window, operand 0']
    %10 = vsyncpa [#allocation3], 0
    %s11 = scalar_lea.sflag [#allocation3], 1
    %12 = vsyncpa %s11, 0
    %13 = vsyncpa [#allocation6], 0
    %14 = vsyncpa [#allocation9], 0
    %15 = vsyncpa [#allocation4], 0
    %s16 = scalar_lea.sflag [#allocation4], 1
    %17 = vsyncpa %s16, 0
    loop: start=0, step=1, limit=8
    $region2: #{tpu_custom_call.1} parent=1 // loop_pre_header
      _
    $region3: #{tpu_custom_call.1} parent=1 // loop_header
      %s19 = sphi 0, %s23
      %p20 = scmp.ge.s32.totalorder %s19, 8
      %s29 = sphi 0, %s31
      %s32 = sphi 0, %s29
      %s33 = sphi 0, %s32
      %s49 = sphi 0, %s33
      %s53 = sphi 0, %s53
      %s55 = sphi 0, %s53
      %s56 = sphi 0, %s55
      %s70 = sphi 0, %s56
      %s74 = sphi 0, %s74
      %s76 = sphi 0, %s74
      %s77 = sphi 0, %s76
      %s91 = sphi 0, %s77
      %s95 = sphi 0, %s95
      %s97 = sphi 0, %s95
      %s98 = sphi 0, %s97
      %s112 = sphi 0, %s98
      %s116 = sphi 0, %s116
      %s118 = sphi 0, %s116
      %s119 = sphi 0, %s118
      %s133 = sphi 0, %s119
      %s139 = sphi 0, %s141
      %s142 = sphi 0, %s139
      %s143 = sphi 0, %s142
      %s159 = sphi 0, %s143
    $region4: #{tpu_custom_call.1} parent=1 // loop_header_branch
      %22 = sbr.rel (%p20) target = $region8
    $region5: #{tpu_custom_call.1} parent=1 // loop_body
      %s24 = ssub.s32 %s19, 1
      %s25 = ssub.s32 %s19, 2
      %s26 = sadd.s32 %s19, 1
      %s27 = ssub.s32 %s19, %s26
      %p28 = scmp.eq.s32.totalorder %s27, 0
      %s30 = sadd.s32 %s29, 1
      %s31 = scalar_select %p28, %s29, %s30
      %p34 = pneg %p28
      %p35 = scmp.eq.s32.totalorder %s19, 5
      %p36 = por %p34, %p35
      %p37 = scmp.ne.s32.totalorder %s29, %s32
      %p38 = scmp.eq.s32.totalorder %s19, 0
      %p39 = por %p37, %p38
      %p40 = scmp.ne.s32.totalorder %s29, %s32
      %p41 = scmp.eq.s32.totalorder %s24, 5
      %p42 = por %p40, %p41
      %p43 = scmp.ne.s32.totalorder %s32, %s33
      %p44 = scmp.eq.s32.totalorder %s24, 0
      %p45 = por %p43, %p44
      %p46 = scmp.ne.s32.totalorder %s32, %s33
      %p47 = scmp.eq.s32.totalorder %s25, 5
      %p48 = por %p46, %p47
      %p50 = scmp.ne.s32.totalorder %s33, %s49
      %p51 = scmp.eq.s32.totalorder %s25, 0
      %p52 = por %p50, %p51
      %s54 = sadd.s32 %s53, 1
      %p57 = scmp.eq.s32.totalorder %s19, 5
      %p58 = scmp.ne.s32.totalorder %s53, %s55
      %p59 = scmp.eq.s32.totalorder %s19, 0
      %p60 = por %p58, %p59
      %p61 = scmp.ne.s32.totalorder %s53, %s55
      %p62 = scmp.eq.s32.totalorder %s24, 5
      %p63 = por %p61, %p62
      %p64 = scmp.ne.s32.totalorder %s55, %s56
      %p65 = scmp.eq.s32.totalorder %s24, 0
      %p66 = por %p64, %p65
      %p67 = scmp.ne.s32.totalorder %s55, %s56
      %p68 = scmp.eq.s32.totalorder %s25, 5
      %p69 = por %p67, %p68
      %p71 = scmp.ne.s32.totalorder %s56, %s70
      %p72 = scmp.eq.s32.totalorder %s25, 0
      %p73 = por %p71, %p72
      %s75 = sadd.s32 %s74, 1
      %p78 = scmp.eq.s32.totalorder %s19, 5
      %p79 = scmp.ne.s32.totalorder %s74, %s76
      %p80 = scmp.eq.s32.totalorder %s19, 0
      %p81 = por %p79, %p80
      %p82 = scmp.ne.s32.totalorder %s74, %s76
      %p83 = scmp.eq.s32.totalorder %s24, 5
      %p84 = por %p82, %p83
      %p85 = scmp.ne.s32.totalorder %s76, %s77
      %p86 = scmp.eq.s32.totalorder %s24, 0
      %p87 = por %p85, %p86
      %p88 = scmp.ne.s32.totalorder %s76, %s77
      %p89 = scmp.eq.s32.totalorder %s25, 5
      %p90 = por %p88, %p89
      %p92 = scmp.ne.s32.totalorder %s77, %s91
      %p93 = scmp.eq.s32.totalorder %s25, 0
      %p94 = por %p92, %p93
      %s96 = sadd.s32 %s95, 1
      %p99 = scmp.eq.s32.totalorder %s19, 5
      %p100 = scmp.ne.s32.totalorder %s95, %s97
      %p101 = scmp.eq.s32.totalorder %s19, 0
      %p102 = por %p100, %p101
      %p103 = scmp.ne.s32.totalorder %s95, %s97
      %p104 = scmp.eq.s32.totalorder %s24, 5
      %p105 = por %p103, %p104
      %p106 = scmp.ne.s32.totalorder %s97, %s98
      %p107 = scmp.eq.s32.totalorder %s24, 0
      %p108 = por %p106, %p107
      %p109 = scmp.ne.s32.totalorder %s97, %s98
      %p110 = scmp.eq.s32.totalorder %s25, 5
      %p111 = por %p109, %p110
      %p113 = scmp.ne.s32.totalorder %s98, %s112
      %p114 = scmp.eq.s32.totalorder %s25, 0
      %p115 = por %p113, %p114
      %s117 = sadd.s32 %s116, 1
      %p120 = scmp.eq.s32.totalorder %s19, 5
      %p121 = scmp.ne.s32.totalorder %s116, %s118
      %p122 = scmp.eq.s32.totalorder %s19, 0
      %p123 = por %p121, %p122
      %p124 = scmp.ne.s32.totalorder %s116, %s118
      %p125 = scmp.eq.s32.totalorder %s24, 5
      %p126 = por %p124, %p125
      %p127 = scmp.ne.s32.totalorder %s118, %s119
      %p128 = scmp.eq.s32.totalorder %s24, 0
      %p129 = por %p127, %p128
      %p130 = scmp.ne.s32.totalorder %s118, %s119
      %p131 = scmp.eq.s32.totalorder %s25, 5
      %p132 = por %p130, %p131
      %p134 = scmp.ne.s32.totalorder %s119, %s133
      %p135 = scmp.eq.s32.totalorder %s25, 0
      %p136 = por %p134, %p135
      %s137 = ssub.s32 %s19, %s26
      %p138 = scmp.eq.s32.totalorder %s137, 0
      %s140 = sadd.s32 %s139, 1
      %s141 = scalar_select %p138, %s139, %s140
      %p144 = pneg %p138
      %p145 = scmp.eq.s32.totalorder %s19, 5
      %p146 = por %p144, %p145
      %p147 = scmp.ne.s32.totalorder %s139, %s142
      %p148 = scmp.eq.s32.totalorder %s19, 0
      %p149 = por %p147, %p148
      %p150 = scmp.ne.s32.totalorder %s139, %s142
      %p151 = scmp.eq.s32.totalorder %s24, 5
      %p152 = por %p150, %p151
      %p153 = scmp.ne.s32.totalorder %s142, %s143
      %p154 = scmp.eq.s32.totalorder %s24, 0
      %p155 = por %p153, %p154
      %p156 = scmp.ne.s32.totalorder %s142, %s143
      %p157 = scmp.eq.s32.totalorder %s25, 5
      %p158 = por %p156, %p157
      %p160 = scmp.ne.s32.totalorder %s143, %s159
      %p161 = scmp.eq.s32.totalorder %s25, 0
      %p162 = por %p160, %p161
      %p163 = scmp.le.s32.totalorder 1, %s19
      %p164 = scmp.lt.s32.totalorder %s19, 7
      %p165 = pnand %p163, %p164
      %p166 = pneg %p165
      // Predicated region
      $region9: #{tpu_custom_call.1} parent=5 // pred_check
        _
      $region10: #{tpu_custom_call.1} parent=5 // pred_check_branch
        %168 = sbr.rel (%p165) target = $region12
      $region11: #{tpu_custom_call.1} parent=5 // pred_region
        %s169 = ssub.s32 %s19, 1
        // Predicated region
        $region13: #{tpu_custom_call.1} parent=11 // pred_check
          %p170 = pneg %p66
        $region14: #{tpu_custom_call.1} parent=11 // pred_check_branch
          %172 = sbr.rel (%p170) target = $region16
        $region15: #{tpu_custom_call.1} parent=11 // pred_region
          %s174 = ssub.s32 288, 288
          %175 = vsyncadd [#allocation6], %s174
          %s176 = sshll.u32 [#allocation5], 4
          %s177 = int_to_ptr.vmem [resolvable:$true] %s176
          %182 = dma.hbm_to_vmem [thread:$0]  %s1, 288, %s177, [#allocation6], 32, 32, 2
        $region16: #{tpu_custom_call.1} parent=11 // pred_fallthru
          _
        // Predicated region
        $region17: #{tpu_custom_call.1} parent=11 // pred_check
          %p183 = pneg %p87
        $region18: #{tpu_custom_call.1} parent=11 // pred_check_branch
          %185 = sbr.rel (%p183) target = $region20
        $region19: #{tpu_custom_call.1} parent=11 // pred_region
          %s187 = ssub.s32 16, 16
          %188 = vsyncadd [#allocation6], %s187
          %s190 = sshll.u32 [#allocation7], 4
          %s191 = int_to_ptr.vmem [resolvable:$true] %s190
          %193 = dma.hbm_to_vmem [thread:$0]  %s2, 16, %s191, [#allocation6]
        $region20: #{tpu_custom_call.1} parent=11 // pred_fallthru
          _
        // Predicated region
        $region21: #{tpu_custom_call.1} parent=11 // pred_check
          %p194 = pneg %p108
        $region22: #{tpu_custom_call.1} parent=11 // pred_check_branch
          %196 = sbr.rel (%p194) target = $region24
        $region23: #{tpu_custom_call.1} parent=11 // pred_region
          %s198 = ssub.s32 64, 64
          %199 = vsyncadd [#allocation9], %s198
          %s201 = sshll.u32 [#allocation8], 4
          %s202 = int_to_ptr.vmem [resolvable:$true] %s201
          %204 = dma.hbm_to_vmem [thread:$0]  %s3, 64, %s202, [#allocation9]
        $region24: #{tpu_custom_call.1} parent=11 // pred_fallthru
          _
        // Predicated region
        $region25: #{tpu_custom_call.1} parent=11 // pred_check
          %p205 = pneg %p129
        $region26: #{tpu_custom_call.1} parent=11 // pred_check_branch
          %207 = sbr.rel (%p205) target = $region28
        $region27: #{tpu_custom_call.1} parent=11 // pred_region
          %s209 = ssub.s32 128, 128
          %210 = vsyncadd [#allocation9], %s209
          %s212 = sshll.u32 [#allocation10], 4
          %s213 = int_to_ptr.vmem [resolvable:$true] %s212
          %215 = dma.hbm_to_vmem [thread:$0]  %s4, 128, %s213, [#allocation9]
        $region28: #{tpu_custom_call.1} parent=11 // pred_fallthru
          _
      $region12: #{tpu_custom_call.1} parent=5 // pred_fallthru
        _
      %p216 = scmp.lt.s32.totalorder %s19, 6
      // Predicated region
      $region29: #{tpu_custom_call.1} parent=5 // pred_check
        %p217 = pneg %p216
      $region30: #{tpu_custom_call.1} parent=5 // pred_check_branch
        %219 = sbr.rel (%p217) target = $region32
      $region31: #{tpu_custom_call.1} parent=5 // pred_region
        // Predicated region
        $region33: #{tpu_custom_call.1} parent=31 // pred_check
          %p220 = pneg %p39
        $region34: #{tpu_custom_call.1} parent=31 // pred_check_branch
          %222 = sbr.rel (%p220) target = $region36
        $region35: #{tpu_custom_call.1} parent=31 // pred_region
          %s223 = sand.u32 %s29, 1
          %s224 = scalar_lea.sflag [#allocation3], %s223
          %s225 = sand.u32 %s29, 1
          %s226 = smul.addr %s225, 84
          %s227 = scalar_lea.vmem [#allocation2], %s226
          %s229 = ssub.s32 1344, 1344
          %230 = vsyncadd %s224, %s229
          %s231 = smul.addr %s19, 21
          %s232 = smul.addr %s231, 64
          %s233 = scalar_lea.hbm %s0, %s232
          %s234 = sshll.u32 %s227, 4
          %s235 = int_to_ptr.vmem [resolvable:$true] %s234
          %240 = dma.hbm_to_vmem [thread:$0]  %s233, 1344, %s235, %s224, 64, 64, 4
        $region36: #{tpu_custom_call.1} parent=31 // pred_fallthru
          _
      $region32: #{tpu_custom_call.1} parent=5 // pred_fallthru
        _
      %p241 = scmp.le.s32.totalorder 1, %s19
      %p242 = scmp.lt.s32.totalorder %s19, 7
      %p243 = pnand %p241, %p242
      %p244 = pneg %p243
      // Predicated region
      $region37: #{tpu_custom_call.1} parent=5 // pred_check
        _
      $region38: #{tpu_custom_call.1} parent=5 // pred_check_branch
        %246 = sbr.rel (%p243) target = $region40
      $region39: #{tpu_custom_call.1} parent=5 // pred_region
        %s247 = ssub.s32 %s19, 1
        %s248 = sand.u32 %s32, 1
        %s249 = scalar_lea.sflag [#allocation3], %s248
        %s250 = sand.u32 %s32, 1
        %s251 = smul.addr %s250, 84
        %s252 = scalar_lea.vmem [#allocation2], %s251
        // Predicated region
        $region41: #{tpu_custom_call.1} parent=39 // pred_check
          %p253 = pneg %p45
        $region42: #{tpu_custom_call.1} parent=39 // pred_check_branch
          %255 = sbr.rel (%p253) target = $region44
        $region43: #{tpu_custom_call.1} parent=39 // pred_region
          %256 = dma.done %s249, 1344
        $region44: #{tpu_custom_call.1} parent=39 // pred_fallthru
          _
        // Predicated region
        $region45: #{tpu_custom_call.1} parent=39 // pred_check
          %p257 = pneg %p66
        $region46: #{tpu_custom_call.1} parent=39 // pred_check_branch
          %259 = sbr.rel (%p257) target = $region48
        $region47: #{tpu_custom_call.1} parent=39 // pred_region
          %260 = dma.done [#allocation6], 288
        $region48: #{tpu_custom_call.1} parent=39 // pred_fallthru
          _
        // Predicated region
        $region49: #{tpu_custom_call.1} parent=39 // pred_check
          %p261 = pneg %p87
        $region50: #{tpu_custom_call.1} parent=39 // pred_check_branch
          %263 = sbr.rel (%p261) target = $region52
        $region51: #{tpu_custom_call.1} parent=39 // pred_region
          %264 = dma.done [#allocation6], 16
        $region52: #{tpu_custom_call.1} parent=39 // pred_fallthru
          _
        // Predicated region
        $region53: #{tpu_custom_call.1} parent=39 // pred_check
          %p265 = pneg %p108
        $region54: #{tpu_custom_call.1} parent=39 // pred_check_branch
          %267 = sbr.rel (%p265) target = $region56
        $region55: #{tpu_custom_call.1} parent=39 // pred_region
          %268 = dma.done [#allocation9], 64
        $region56: #{tpu_custom_call.1} parent=39 // pred_fallthru
          _
        // Predicated region
        $region57: #{tpu_custom_call.1} parent=39 // pred_check
          %p269 = pneg %p129
        $region58: #{tpu_custom_call.1} parent=39 // pred_check_branch
          %271 = sbr.rel (%p269) target = $region60
        $region59: #{tpu_custom_call.1} parent=39 // pred_region
          %272 = dma.done [#allocation9], 128
        $region60: #{tpu_custom_call.1} parent=39 // pred_fallthru
          _
        %s273 = sand.u32 %s32, 1
        %s274 = scalar_lea.sflag [#allocation3], %s273
        %s275 = sand.u32 %s32, 1
        %s276 = smul.addr %s275, 84
        %s277 = scalar_lea.vmem [#allocation2], %s276
        %p278 = pneg %p45
        %p279 = pneg %p42
        %p280 = pneg %p66
        %p281 = pneg %p63
        %p282 = pneg %p87
        %p283 = pneg %p84
        %p284 = pneg %p108
        %p285 = pneg %p105
        %p286 = pneg %p129
        %p287 = pneg %p126
        %p288 = pneg %p155
        %p289 = pneg %p152
        %s290 = sand.u32 %s142, 1
        %s291 = scalar_lea.sflag [#allocation4], %s290
        %s292 = sand.u32 %s142, 1
        %s293 = smul.addr %s292, 8
        %s294 = scalar_lea.vmem [#allocation11], %s293
        %v296 = vld [vmem:[%s252] sm:$0xf]
        %v297 = vld [vmem:[%s252 + $0x4] sm:$0xf]
        %v298 = vld [vmem:[%s252 + $0x8] sm:$0xf]
        %v299 = vld [vmem:[%s252 + $0xc] sm:$0xf]
        %v300 = vld [vmem:[%s252 + $0x10] sm:$0xf]
        %v301 = vld [vmem:[%s252 + $0x14] sm:$0xf]
        %v302 = vld [vmem:[%s252 + $0x18] sm:$0xf]
        %v303 = vld [vmem:[%s252 + $0x1c] sm:$0xf]
        %v304 = vld [vmem:[%s252 + $0x20] sm:$0xf]
        %v305 = vld [vmem:[%s252 + $0x24] sm:$0xf]
        %v306 = vld [vmem:[%s252 + $0x28] sm:$0xf]
        %v307 = vld [vmem:[%s252 + $0x2c] sm:$0xf]
        %v308 = vld [vmem:[%s252 + $0x30] sm:$0xf]
        %v309 = vld [vmem:[%s252 + $0x34] sm:$0xf]
        %v310 = vld [vmem:[%s252 + $0x38] sm:$0xf]
        %v311 = vld [vmem:[%s252 + $0x3c] sm:$0xf]
        %v312 = vld [vmem:[#allocation5] sm:$0x3]
        %v313 = vld [vmem:[%s252 + $0x40] sm:$0x1]
        %s314 = scalar_lea.vmem [#allocation5], 2
        %v315 = vld [vmem:[%s314] sm:$0x3]
        %v333 = vunpack.c.l.b16 %v296
        %v334 = vunpack.c.l.b16 %v297
        %v335 = vunpack.c.l.b16 %v298
        %v336 = vunpack.c.l.b16 %v299
        %v337 = vunpack.c.l.b16 %v300
        %v338 = vunpack.c.l.b16 %v301
        %v339 = vunpack.c.l.b16 %v302
        %v340 = vunpack.c.l.b16 %v303
        %v341 = vunpack.c.l.b16 %v304
        %v342 = vunpack.c.l.b16 %v305
        %v343 = vunpack.c.l.b16 %v306
        %v344 = vunpack.c.l.b16 %v307
        %v345 = vunpack.c.l.b16 %v308
        %v346 = vunpack.c.l.b16 %v309
        %v347 = vunpack.c.l.b16 %v310
        %v348 = vunpack.c.l.b16 %v311
        %v349 = vunpack.c.l.b16 %v313
        %v350 = vpack.c.b16 %v334, %v333
        %v351 = vpack.c.b16 %v336, %v335
        %v352 = vpack.c.b16 %v338, %v337
        %v353 = vpack.c.b16 %v340, %v339
        %v354 = vpack.c.b16 %v342, %v341
        %v355 = vpack.c.b16 %v344, %v343
        %v356 = vpack.c.b16 %v346, %v345
        %v357 = vpack.c.b16 %v348, %v347
        %v358 = vpack.c.b16 %v349, %v349
        %vm359 = vsmask.f32 7424
        %v361 = vshrl.u32 %v350, 16
        %v363 = vshll.u32 %v350, 16
        %v365 = vrot.slane %v363, 1
        %v366 = vor.u32 %v361, %v365
        %v368 = vshll.u32 %v351, 16
        %v370 = vrot.slane %v368, 1
        %v371 = vsel %vm359, %v366, %v370
        %v372 = vshrl.u32 %v351, 16
        %v374 = vor.u32 %v372, %v370
        %v376 = vshll.u32 %v352, 16
        %v378 = vrot.slane %v376, 1
        %v379 = vsel %vm359, %v374, %v378
        %v380 = vshrl.u32 %v352, 16
        %v382 = vor.u32 %v380, %v378
        %v384 = vshll.u32 %v353, 16
        %v386 = vrot.slane %v384, 1
        %v387 = vsel %vm359, %v382, %v386
        %v388 = vshrl.u32 %v353, 16
        %v390 = vor.u32 %v388, %v386
        %v392 = vshll.u32 %v354, 16
        %v394 = vrot.slane %v392, 1
        %v395 = vsel %vm359, %v390, %v394
        %v396 = vshrl.u32 %v354, 16
        %v398 = vor.u32 %v396, %v394
        %v400 = vshll.u32 %v355, 16
        %v402 = vrot.slane %v400, 1
        %v403 = vsel %vm359, %v398, %v402
        %v404 = vshrl.u32 %v355, 16
        %v406 = vor.u32 %v404, %v402
        %v408 = vshll.u32 %v356, 16
        %v410 = vrot.slane %v408, 1
        %v411 = vsel %vm359, %v406, %v410
        %v412 = vshrl.u32 %v356, 16
        %v414 = vor.u32 %v412, %v410
        %v416 = vshll.u32 %v357, 16
        %v418 = vrot.slane %v416, 1
        %v419 = vsel %vm359, %v414, %v418
        %v420 = vshrl.u32 %v357, 16
        %v422 = vor.u32 %v420, %v418
        %v424 = vshll.u32 %v358, 16
        %v426 = vrot.slane %v424, 1
        %v427 = vsel %vm359, %v422, %v426
        %vm428 = vcmask 31744
        %v430 = vsel %vm428, %v371, 0
        %v433 = vsel %vm428, %v379, 0
        %v436 = vsel %vm428, %v387, 0
        %v439 = vsel %vm428, %v395, 0
        %v442 = vsel %vm428, %v403, 0
        %v445 = vsel %vm428, %v411, 0
        %v448 = vsel %vm428, %v419, 0
        %v451 = vsel %vm428, %v427, 0
        %vm453 = vcmask 1041408
        %v455 = vsel %vm453, %v315, 0
        %457 = vmatprep.subr.bf16.mxu0 0
        %458 = vmatpush1.bf16.msra.mxu0 %v455
        %459 = vmatprep.subr.bf16.mxu0 0
        %460 = vmatpush1.bf16.msra.mxu0 0
        %461 = vmatprep.subr.bf16.mxu0 0
        %462 = vmatpush1.bf16.msra.mxu0 0
        %463 = vmatprep.subr.bf16.mxu0 0
        %464 = vmatpush1.bf16.msra.mxu0 0
        %465 = vmatprep.subr.bf16.mxu0 0
        %466 = vmatpush1.bf16.msra.mxu0 0
        %467 = vmatprep.subr.bf16.mxu0 0
        %468 = vmatpush1.bf16.msra.mxu0 0
        %469 = vmatprep.subr.bf16.mxu0 0
        %470 = vmatpush1.bf16.msra.mxu0 0
        %471 = vmatprep.subr.bf16.mxu0 0
        %472 = vmatpush1.bf16.msra.mxu0 0
        %473 = vmatprep.subr.bf16.mxu0 0
        %474 = vmatpush1.bf16.msra.mxu0 0
        %475 = vmatprep.subr.bf16.mxu0 0
        %476 = vmatpush1.bf16.msra.mxu0 0
        %477 = vmatprep.subr.bf16.mxu0 0
        %478 = vmatpush1.bf16.msra.mxu0 0
        %479 = vmatprep.subr.bf16.mxu0 0
        %480 = vmatpush1.bf16.msra.mxu0 0
        %481 = vmatprep.subr.bf16.mxu0 0
        %482 = vmatpush1.bf16.msra.mxu0 0
        %483 = vmatprep.subr.bf16.mxu0 0
        %484 = vmatpush1.bf16.msra.mxu0 0
        %485 = vmatprep.subr.bf16.mxu0 0
        %486 = vmatpush1.bf16.msra.mxu0 0
        %487 = vmatprep.subr.bf16.mxu0 0
        %488 = vmatpush1.bf16.msra.mxu0 0
        %489 = vmatprep.mubr.bf16.mxu0 0
        %490 = vmatmul.mubr.bf16.gmra.mrb[0].mxu0 %v430
        %v491 = vpop.f32.mrb[0].mxu0
        %v492 = vadd.f32 0.0, %v491
        %v493 = vpop.f32.mrb[0].mxu0
        %v494 = vpop.f32.mrb[0].mxu0
        %v495 = vadd.f32 0.0, %v494
        %v496 = vpop.f32.mrb[0].mxu0
        %497 = vmatprep.mubr.bf16.mxu0 0
        %498 = vmatmul.mubr.bf16.gmra.mrb[0].mxu0 %v433
        %v499 = vpop.f32.mrb[0].mxu0
        %v500 = vadd.f32 0.0, %v499
        %v501 = vpop.f32.mrb[0].mxu0
        %v502 = vpop.f32.mrb[0].mxu0
        %v503 = vadd.f32 0.0, %v502
        %v504 = vpop.f32.mrb[0].mxu0
        %505 = vmatprep.mubr.bf16.mxu0 0
        %506 = vmatmul.mubr.bf16.gmra.mrb[0].mxu0 %v436
        %v507 = vpop.f32.mrb[0].mxu0
        %v508 = vadd.f32 0.0, %v507
        %v509 = vpop.f32.mrb[0].mxu0
        %v510 = vpop.f32.mrb[0].mxu0
        %v511 = vadd.f32 0.0, %v510
        %v512 = vpop.f32.mrb[0].mxu0
        %513 = vmatprep.mubr.bf16.mxu0 0
        %514 = vmatmul.mubr.bf16.gmra.mrb[0].mxu0 %v439
        %v515 = vpop.f32.mrb[0].mxu0
        %v516 = vadd.f32 0.0, %v515
        %v517 = vpop.f32.mrb[0].mxu0
        %v518 = vpop.f32.mrb[0].mxu0
        %v519 = vadd.f32 0.0, %v518
        %v520 = vpop.f32.mrb[0].mxu0
        %521 = vmatprep.mubr.bf16.mxu0 0
        %522 = vmatmul.mubr.bf16.gmra.mrb[0].mxu0 %v442
        %v523 = vpop.f32.mrb[0].mxu0
        %v524 = vadd.f32 0.0, %v523
        %v525 = vpop.f32.mrb[0].mxu0
        %v526 = vpop.f32.mrb[0].mxu0
        %v527 = vadd.f32 0.0, %v526
        %v528 = vpop.f32.mrb[0].mxu0
        %529 = vmatprep.mubr.bf16.mxu0 0
        %530 = vmatmul.mubr.bf16.gmra.mrb[0].mxu0 %v445
        %v531 = vpop.f32.mrb[0].mxu0
        %v532 = vadd.f32 0.0, %v531
        %v533 = vpop.f32.mrb[0].mxu0
        %v534 = vpop.f32.mrb[0].mxu0
        %v535 = vadd.f32 0.0, %v534
        %v536 = vpop.f32.mrb[0].mxu0
        %537 = vmatprep.mubr.bf16.mxu0 0
        %538 = vmatmul.mubr.bf16.gmra.mrb[0].mxu0 %v448
        %v539 = vpop.f32.mrb[0].mxu0
        %v540 = vadd.f32 0.0, %v539
        %v541 = vpop.f32.mrb[0].mxu0
        %v542 = vpop.f32.mrb[0].mxu0
        %v543 = vadd.f32 0.0, %v542
        %v544 = vpop.f32.mrb[0].mxu0
        %545 = vmatprep.mubr.bf16.mxu0 0
        %546 = vmatmul.mubr.bf16.gmra.mrb[0].mxu0 %v451
        %v547 = vpop.f32.mrb[0].mxu0
        %v548 = vadd.f32 0.0, %v547
        %v549 = vpop.f32.mrb[0].mxu0
        %v550 = vpop.f32.mrb[0].mxu0
        %v551 = vadd.f32 0.0, %v550
        %v552 = vpop.f32.mrb[0].mxu0
        %553 = vdwg.mxu0
        %v554 = vsel %vm428, %v350, 0
        %v556 = vsel %vm428, %v351, 0
        %v558 = vsel %vm428, %v352, 0
        %v560 = vsel %vm428, %v353, 0
        %v562 = vsel %vm428, %v354, 0
        %v564 = vsel %vm428, %v355, 0
        %v566 = vsel %vm428, %v356, 0
        %v568 = vsel %vm428, %v357, 0
        %v571 = vsel %vm453, %v312, 0
        %573 = vmatprep.subr.bf16.mxu0 0
        %574 = vmatpush1.bf16.msra.mxu0 %v571
        %575 = vmatprep.subr.bf16.mxu0 0
        %576 = vmatpush1.bf16.msra.mxu0 0
        %577 = vmatprep.subr.bf16.mxu0 0
        %578 = vmatpush1.bf16.msra.mxu0 0
        %579 = vmatprep.subr.bf16.mxu0 0
        %580 = vmatpush1.bf16.msra.mxu0 0
        %581 = vmatprep.subr.bf16.mxu0 0
        %582 = vmatpush1.bf16.msra.mxu0 0
        %583 = vmatprep.subr.bf16.mxu0 0
        %584 = vmatpush1.bf16.msra.mxu0 0
        %585 = vmatprep.subr.bf16.mxu0 0
        %586 = vmatpush1.bf16.msra.mxu0 0
        %587 = vmatprep.subr.bf16.mxu0 0
        %588 = vmatpush1.bf16.msra.mxu0 0
        %589 = vmatprep.subr.bf16.mxu0 0
        %590 = vmatpush1.bf16.msra.mxu0 0
        %591 = vmatprep.subr.bf16.mxu0 0
        %592 = vmatpush1.bf16.msra.mxu0 0
        %593 = vmatprep.subr.bf16.mxu0 0
        %594 = vmatpush1.bf16.msra.mxu0 0
        %595 = vmatprep.subr.bf16.mxu0 0
        %596 = vmatpush1.bf16.msra.mxu0 0
        %597 = vmatprep.subr.bf16.mxu0 0
        %598 = vmatpush1.bf16.msra.mxu0 0
        %599 = vmatprep.subr.bf16.mxu0 0
        %600 = vmatpush1.bf16.msra.mxu0 0
        %601 = vmatprep.subr.bf16.mxu0 0
        %602 = vmatpush1.bf16.msra.mxu0 0
        %603 = vmatprep.subr.bf16.mxu0 0
        %604 = vmatpush1.bf16.msra.mxu0 0
        %605 = vmatprep.mubr.bf16.mxu0 0
        %606 = vmatmul.mubr.bf16.gmra.mrb[0].mxu0 %v554
        %v607 = vpop.f32.mrb[0].mxu0
        %v608 = vadd.f32 %v492, %v607
        %v609 = vpop.f32.mrb[0].mxu0
        %v610 = vpop.f32.mrb[0].mxu0
        %v611 = vadd.f32 %v495, %v610
        %v612 = vpop.f32.mrb[0].mxu0
        %613 = vmatprep.mubr.bf16.mxu0 0
        %614 = vmatmul.mubr.bf16.gmra.mrb[0].mxu0 %v556
        %v615 = vpop.f32.mrb[0].mxu0
        %v616 = vadd.f32 %v500, %v615
        %v617 = vpop.f32.mrb[0].mxu0
        %v618 = vpop.f32.mrb[0].mxu0
        %v619 = vadd.f32 %v503, %v618
        %v620 = vpop.f32.mrb[0].mxu0
        %621 = vmatprep.mubr.bf16.mxu0 0
        %622 = vmatmul.mubr.bf16.gmra.mrb[0].mxu0 %v558
        %v623 = vpop.f32.mrb[0].mxu0
        %v624 = vadd.f32 %v508, %v623
        %v625 = vpop.f32.mrb[0].mxu0
        %v626 = vpop.f32.mrb[0].mxu0
        %v627 = vadd.f32 %v511, %v626
        %v628 = vpop.f32.mrb[0].mxu0
        %629 = vmatprep.mubr.bf16.mxu0 0
        %630 = vmatmul.mubr.bf16.gmra.mrb[0].mxu0 %v560
        %v631 = vpop.f32.mrb[0].mxu0
        %v632 = vadd.f32 %v516, %v631
        %v633 = vpop.f32.mrb[0].mxu0
        %v634 = vpop.f32.mrb[0].mxu0
        %v635 = vadd.f32 %v519, %v634
        %v636 = vpop.f32.mrb[0].mxu0
        %637 = vmatprep.mubr.bf16.mxu0 0
        %638 = vmatmul.mubr.bf16.gmra.mrb[0].mxu0 %v562
        %v639 = vpop.f32.mrb[0].mxu0
        %v640 = vadd.f32 %v524, %v639
        %v641 = vpop.f32.mrb[0].mxu0
        %v642 = vpop.f32.mrb[0].mxu0
        %v643 = vadd.f32 %v527, %v642
        %v644 = vpop.f32.mrb[0].mxu0
        %645 = vmatprep.mubr.bf16.mxu0 0
        %646 = vmatmul.mubr.bf16.gmra.mrb[0].mxu0 %v564
        %v647 = vpop.f32.mrb[0].mxu0
        %v648 = vadd.f32 %v532, %v647
        %v649 = vpop.f32.mrb[0].mxu0
        %v650 = vpop.f32.mrb[0].mxu0
        %v651 = vadd.f32 %v535, %v650
        %v652 = vpop.f32.mrb[0].mxu0
        %653 = vmatprep.mubr.bf16.mxu0 0
        %654 = vmatmul.mubr.bf16.gmra.mrb[0].mxu0 %v566
        %v655 = vpop.f32.mrb[0].mxu0
        %v656 = vadd.f32 %v540, %v655
        %v657 = vpop.f32.mrb[0].mxu0
        %v658 = vpop.f32.mrb[0].mxu0
        %v659 = vadd.f32 %v543, %v658
        %v660 = vpop.f32.mrb[0].mxu0
        %661 = vmatprep.mubr.bf16.mxu0 0
        %662 = vmatmul.mubr.bf16.gmra.mrb[0].mxu0 %v568
        %v663 = vpop.f32.mrb[0].mxu0
        %v664 = vadd.f32 %v548, %v663
        %v665 = vpop.f32.mrb[0].mxu0
        %v666 = vpop.f32.mrb[0].mxu0
        %v667 = vadd.f32 %v551, %v666
        %v668 = vpop.f32.mrb[0].mxu0
        %669 = vdwg.mxu0
        %v670 = vld [vmem:[%s252] sm:$0xe]
        %s671 = scalar_lea.vmem [#allocation5], 4
        %v672 = vld [vmem:[%s671] sm:$0x3]
        %v674 = vunpack.c.l.b16 %v670
        %v675 = vpack.c.b16 %v334, %v674
        %vm676 = vcmask 1046528
        %v677 = vrot.slane %v675, 1
        %v678 = vrot.slane %v351, 1
        %v679 = vsel %vm676, %v677, %v678
        %v680 = vrot.slane %v352, 1
        %v681 = vsel %vm676, %v678, %v680
        %v682 = vrot.slane %v353, 1
        %v683 = vsel %vm676, %v680, %v682
        %v684 = vrot.slane %v354, 1
        %v685 = vsel %vm676, %v682, %v684
        %v686 = vrot.slane %v355, 1
        %v687 = vsel %vm676, %v684, %v686
        %v688 = vrot.slane %v356, 1
        %v689 = vsel %vm676, %v686, %v688
        %v690 = vrot.slane %v357, 1
        %v691 = vsel %vm676, %v688, %v690
        %v692 = vrot.slane %v358, 1
        %v693 = vsel %vm676, %v690, %v692
        %v695 = vsel %vm428, %v679, 0
        %v698 = vsel %vm428, %v681, 0
        %v701 = vsel %vm428, %v683, 0
        %v704 = vsel %vm428, %v685, 0
        %v707 = vsel %vm428, %v687, 0
        %v710 = vsel %vm428, %v689, 0
        %v713 = vsel %vm428, %v691, 0
        %v716 = vsel %vm428, %v693, 0
        %v719 = vsel %vm453, %v672, 0
        %721 = vmatprep.subr.bf16.mxu0 0
        %722 = vmatpush1.bf16.msra.mxu0 %v719
        %723 = vmatprep.subr.bf16.mxu0 0
        %724 = vmatpush1.bf16.msra.mxu0 0
        %725 = vmatprep.subr.bf16.mxu0 0
        %726 = vmatpush1.bf16.msra.mxu0 0
        %727 = vmatprep.subr.bf16.mxu0 0
        %728 = vmatpush1.bf16.msra.mxu0 0
        %729 = vmatprep.subr.bf16.mxu0 0
        %730 = vmatpush1.bf16.msra.mxu0 0
        %731 = vmatprep.subr.bf16.mxu0 0
        %732 = vmatpush1.bf16.msra.mxu0 0
        %733 = vmatprep.subr.bf16.mxu0 0
        %734 = vmatpush1.bf16.msra.mxu0 0
        %735 = vmatprep.subr.bf16.mxu0 0
        %736 = vmatpush1.bf16.msra.mxu0 0
        %737 = vmatprep.subr.bf16.mxu0 0
        %738 = vmatpush1.bf16.msra.mxu0 0
        %739 = vmatprep.subr.bf16.mxu0 0
        %740 = vmatpush1.bf16.msra.mxu0 0
        %741 = vmatprep.subr.bf16.mxu0 0
        %742 = vmatpush1.bf16.msra.mxu0 0
        %743 = vmatprep.subr.bf16.mxu0 0
        %744 = vmatpush1.bf16.msra.mxu0 0
        %745 = vmatprep.subr.bf16.mxu0 0
        %746 = vmatpush1.bf16.msra.mxu0 0
        %747 = vmatprep.subr.bf16.mxu0 0
        %748 = vmatpush1.bf16.msra.mxu0 0
        %749 = vmatprep.subr.bf16.mxu0 0
        %750 = vmatpush1.bf16.msra.mxu0 0
        %751 = vmatprep.subr.bf16.mxu0 0
        %752 = vmatpush1.bf16.msra.mxu0 0
        %753 = vmatprep.mubr.bf16.mxu0 0
        %754 = vmatmul.mubr.bf16.gmra.mrb[0].mxu0 %v695
        %v755 = vpop.f32.mrb[0].mxu0
        %v756 = vadd.f32 0.0, %v755
        %v757 = vpop.f32.mrb[0].mxu0
        %v758 = vpop.f32.mrb[0].mxu0
        %v759 = vadd.f32 0.0, %v758
        %v760 = vpop.f32.mrb[0].mxu0
        %761 = vmatprep.mubr.bf16.mxu0 0
        %762 = vmatmul.mubr.bf16.gmra.mrb[0].mxu0 %v698
        %v763 = vpop.f32.mrb[0].mxu0
        %v764 = vadd.f32 0.0, %v763
        %v765 = vpop.f32.mrb[0].mxu0
        %v766 = vpop.f32.mrb[0].mxu0
        %v767 = vadd.f32 0.0, %v766
        %v768 = vpop.f32.mrb[0].mxu0
        %769 = vmatprep.mubr.bf16.mxu0 0
        %770 = vmatmul.mubr.bf16.gmra.mrb[0].mxu0 %v701
        %v771 = vpop.f32.mrb[0].mxu0
        %v772 = vadd.f32 0.0, %v771
        %v773 = vpop.f32.mrb[0].mxu0
        %v774 = vpop.f32.mrb[0].mxu0
        %v775 = vadd.f32 0.0, %v774
        %v776 = vpop.f32.mrb[0].mxu0
        %777 = vmatprep.mubr.bf16.mxu0 0
        %778 = vmatmul.mubr.bf16.gmra.mrb[0].mxu0 %v704
        %v779 = vpop.f32.mrb[0].mxu0
        %v780 = vadd.f32 0.0, %v779
        %v781 = vpop.f32.mrb[0].mxu0
        %v782 = vpop.f32.mrb[0].mxu0
        %v783 = vadd.f32 0.0, %v782
        %v784 = vpop.f32.mrb[0].mxu0
        %785 = vmatprep.mubr.bf16.mxu0 0
        %786 = vmatmul.mubr.bf16.gmra.mrb[0].mxu0 %v707
        %v787 = vpop.f32.mrb[0].mxu0
        %v788 = vadd.f32 0.0, %v787
        %v789 = vpop.f32.mrb[0].mxu0
        %v790 = vpop.f32.mrb[0].mxu0
        %v791 = vadd.f32 0.0, %v790
        %v792 = vpop.f32.mrb[0].mxu0
        %793 = vmatprep.mubr.bf16.mxu0 0
        %794 = vmatmul.mubr.bf16.gmra.mrb[0].mxu0 %v710
        %v795 = vpop.f32.mrb[0].mxu0
        %v796 = vadd.f32 0.0, %v795
        %v797 = vpop.f32.mrb[0].mxu0
        %v798 = vpop.f32.mrb[0].mxu0
        %v799 = vadd.f32 0.0, %v798
        %v800 = vpop.f32.mrb[0].mxu0
        %801 = vmatprep.mubr.bf16.mxu0 0
        %802 = vmatmul.mubr.bf16.gmra.mrb[0].mxu0 %v713
        %v803 = vpop.f32.mrb[0].mxu0
        %v804 = vadd.f32 0.0, %v803
        %v805 = vpop.f32.mrb[0].mxu0
        %v806 = vpop.f32.mrb[0].mxu0
        %v807 = vadd.f32 0.0, %v806
        %v808 = vpop.f32.mrb[0].mxu0
        %809 = vmatprep.mubr.bf16.mxu0 0
        %810 = vmatmul.mubr.bf16.gmra.mrb[0].mxu0 %v716
        %v811 = vpop.f32.mrb[0].mxu0
        %v812 = vadd.f32 0.0, %v811
        %v813 = vpop.f32.mrb[0].mxu0
        %v814 = vpop.f32.mrb[0].mxu0
        %v815 = vadd.f32 0.0, %v814
        %v816 = vpop.f32.mrb[0].mxu0
        %817 = vdwg.mxu0
        %v818 = vadd.f32 %v608, %v756
        %v819 = vadd.f32 %v611, %v759
        %v820 = vadd.f32 %v616, %v764
        %v821 = vadd.f32 %v619, %v767
        %v822 = vadd.f32 %v624, %v772
        %v823 = vadd.f32 %v627, %v775
        %v824 = vadd.f32 %v632, %v780
        %v825 = vadd.f32 %v635, %v783
        %v826 = vadd.f32 %v640, %v788
        %v827 = vadd.f32 %v643, %v791
        %v828 = vadd.f32 %v648, %v796
        %v829 = vadd.f32 %v651, %v799
        %v830 = vadd.f32 %v656, %v804
        %v831 = vadd.f32 %v659, %v807
        %v832 = vadd.f32 %v664, %v812
        %v833 = vadd.f32 %v667, %v815
        %v834 = vld [vmem:[%s252 + $0x8] sm:$0xe]
        %v835 = vld [vmem:[%s252 + $0xc] sm:$0xf]
        %v836 = vld [vmem:[%s252 + $0x10] sm:$0xf]
        %v837 = vld [vmem:[%s252 + $0x14] sm:$0xf]
        %v838 = vld [vmem:[%s252 + $0x18] sm:$0xf]
        %v839 = vld [vmem:[%s252 + $0x1c] sm:$0xf]
        %v840 = vld [vmem:[%s252 + $0x20] sm:$0xf]
        %v841 = vld [vmem:[%s252 + $0x24] sm:$0xf]
        %v842 = vld [vmem:[%s252 + $0x28] sm:$0xf]
        %v843 = vld [vmem:[%s252 + $0x2c] sm:$0xf]
        %v844 = vld [vmem:[%s252 + $0x30] sm:$0xf]
        %v845 = vld [vmem:[%s252 + $0x34] sm:$0xf]
        %v846 = vld [vmem:[%s252 + $0x38] sm:$0xf]
        %v847 = vld [vmem:[%s252 + $0x3c] sm:$0xf]
        %v848 = vld [vmem:[%s252 + $0x40] sm:$0xf]
        %v849 = vld [vmem:[%s252 + $0x44] sm:$0xf]
        %v850 = vld [vmem:[%s252 + $0x48] sm:$0x1]
        %s851 = scalar_lea.vmem [#allocation5], 6
        %v852 = vld [vmem:[%s851] sm:$0x3]
        %v870 = vunpack.c.l.b16 %v834
        %v871 = vunpack.c.l.b16 %v835
        %v872 = vunpack.c.l.b16 %v836
        %v873 = vunpack.c.l.b16 %v837
        %v874 = vunpack.c.l.b16 %v838
        %v875 = vunpack.c.l.b16 %v839
        %v876 = vunpack.c.l.b16 %v840
        %v877 = vunpack.c.l.b16 %v841
        %v878 = vunpack.c.l.b16 %v842
        %v879 = vunpack.c.l.b16 %v843
        %v880 = vunpack.c.l.b16 %v844
        %v881 = vunpack.c.l.b16 %v845
        %v882 = vunpack.c.l.b16 %v846
        %v883 = vunpack.c.l.b16 %v847
        %v884 = vunpack.c.l.b16 %v848
        %v885 = vunpack.c.l.b16 %v849
        %v886 = vunpack.c.l.b16 %v850
        %v887 = vpack.c.b16 %v871, %v870
        %v888 = vpack.c.b16 %v873, %v872
        %v889 = vpack.c.b16 %v875, %v874
        %v890 = vpack.c.b16 %v877, %v876
        %v891 = vpack.c.b16 %v879, %v878
        %v892 = vpack.c.b16 %v881, %v880
        %v893 = vpack.c.b16 %v883, %v882
        %v894 = vpack.c.b16 %v885, %v884
        %v895 = vpack.c.b16 %v886, %v886
        %v896 = vrot.slane %v887, 1
        %v897 = vrot.slane %v888, 1
        %v898 = vsel %vm676, %v896, %v897
        %v899 = vrot.slane %v889, 1
        %v900 = vsel %vm676, %v897, %v899
        %v901 = vrot.slane %v890, 1
        %v902 = vsel %vm676, %v899, %v901
        %v903 = vrot.slane %v891, 1
        %v904 = vsel %vm676, %v901, %v903
        %v905 = vrot.slane %v892, 1
        %v906 = vsel %vm676, %v903, %v905
        %v907 = vrot.slane %v893, 1
        %v908 = vsel %vm676, %v905, %v907
        %v909 = vrot.slane %v894, 1
        %v910 = vsel %vm676, %v907, %v909
        %v911 = vrot.slane %v895, 1
        %v912 = vsel %vm676, %v909, %v911
        %v914 = vsel %vm428, %v898, 0
        %v917 = vsel %vm428, %v900, 0
        %v920 = vsel %vm428, %v902, 0
        %v923 = vsel %vm428, %v904, 0
        %v926 = vsel %vm428, %v906, 0
        %v929 = vsel %vm428, %v908, 0
        %v932 = vsel %vm428, %v910, 0
        %v935 = vsel %vm428, %v912, 0
        %v938 = vsel %vm453, %v852, 0
        %940 = vmatprep.subr.bf16.mxu0 0
        %941 = vmatpush1.bf16.msra.mxu0 %v938
        %942 = vmatprep.subr.bf16.mxu0 0
        %943 = vmatpush1.bf16.msra.mxu0 0
        %944 = vmatprep.subr.bf16.mxu0 0
        %945 = vmatpush1.bf16.msra.mxu0 0
        %946 = vmatprep.subr.bf16.mxu0 0
        %947 = vmatpush1.bf16.msra.mxu0 0
        %948 = vmatprep.subr.bf16.mxu0 0
        %949 = vmatpush1.bf16.msra.mxu0 0
        %950 = vmatprep.subr.bf16.mxu0 0
        %951 = vmatpush1.bf16.msra.mxu0 0
        %952 = vmatprep.subr.bf16.mxu0 0
        %953 = vmatpush1.bf16.msra.mxu0 0
        %954 = vmatprep.subr.bf16.mxu0 0
        %955 = vmatpush1.bf16.msra.mxu0 0
        %956 = vmatprep.subr.bf16.mxu0 0
        %957 = vmatpush1.bf16.msra.mxu0 0
        %958 = vmatprep.subr.bf16.mxu0 0
        %959 = vmatpush1.bf16.msra.mxu0 0
        %960 = vmatprep.subr.bf16.mxu0 0
        %961 = vmatpush1.bf16.msra.mxu0 0
        %962 = vmatprep.subr.bf16.mxu0 0
        %963 = vmatpush1.bf16.msra.mxu0 0
        %964 = vmatprep.subr.bf16.mxu0 0
        %965 = vmatpush1.bf16.msra.mxu0 0
        %966 = vmatprep.subr.bf16.mxu0 0
        %967 = vmatpush1.bf16.msra.mxu0 0
        %968 = vmatprep.subr.bf16.mxu0 0
        %969 = vmatpush1.bf16.msra.mxu0 0
        %970 = vmatprep.subr.bf16.mxu0 0
        %971 = vmatpush1.bf16.msra.mxu0 0
        %972 = vmatprep.mubr.bf16.mxu0 0
        %973 = vmatmul.mubr.bf16.gmra.mrb[0].mxu0 %v914
        %v974 = vpop.f32.mrb[0].mxu0
        %v975 = vadd.f32 0.0, %v974
        %v976 = vpop.f32.mrb[0].mxu0
        %v977 = vpop.f32.mrb[0].mxu0
        %v978 = vadd.f32 0.0, %v977
        %v979 = vpop.f32.mrb[0].mxu0
        %980 = vmatprep.mubr.bf16.mxu0 0
        %981 = vmatmul.mubr.bf16.gmra.mrb[0].mxu0 %v917
        %v982 = vpop.f32.mrb[0].mxu0
        %v983 = vadd.f32 0.0, %v982
        %v984 = vpop.f32.mrb[0].mxu0
        %v985 = vpop.f32.mrb[0].mxu0
        %v986 = vadd.f32 0.0, %v985
        %v987 = vpop.f32.mrb[0].mxu0
        %988 = vmatprep.mubr.bf16.mxu0 0
        %989 = vmatmul.mubr.bf16.gmra.mrb[0].mxu0 %v920
        %v990 = vpop.f32.mrb[0].mxu0
        %v991 = vadd.f32 0.0, %v990
        %v992 = vpop.f32.mrb[0].mxu0
        %v993 = vpop.f32.mrb[0].mxu0
        %v994 = vadd.f32 0.0, %v993
        %v995 = vpop.f32.mrb[0].mxu0
        %996 = vmatprep.mubr.bf16.mxu0 0
        %997 = vmatmul.mubr.bf16.gmra.mrb[0].mxu0 %v923
        %v998 = vpop.f32.mrb[0].mxu0
        %v999 = vadd.f32 0.0, %v998
        %v1000 = vpop.f32.mrb[0].mxu0
        %v1001 = vpop.f32.mrb[0].mxu0
        %v1002 = vadd.f32 0.0, %v1001
        %v1003 = vpop.f32.mrb[0].mxu0
        %1004 = vmatprep.mubr.bf16.mxu0 0
        %1005 = vmatmul.mubr.bf16.gmra.mrb[0].mxu0 %v926
        %v1006 = vpop.f32.mrb[0].mxu0
        %v1007 = vadd.f32 0.0, %v1006
        %v1008 = vpop.f32.mrb[0].mxu0
        %v1009 = vpop.f32.mrb[0].mxu0
        %v1010 = vadd.f32 0.0, %v1009
        %v1011 = vpop.f32.mrb[0].mxu0
        %1012 = vmatprep.mubr.bf16.mxu0 0
        %1013 = vmatmul.mubr.bf16.gmra.mrb[0].mxu0 %v929
        %v1014 = vpop.f32.mrb[0].mxu0
        %v1015 = vadd.f32 0.0, %v1014
        %v1016 = vpop.f32.mrb[0].mxu0
        %v1017 = vpop.f32.mrb[0].mxu0
        %v1018 = vadd.f32 0.0, %v1017
        %v1019 = vpop.f32.mrb[0].mxu0
        %1020 = vmatprep.mubr.bf16.mxu0 0
        %1021 = vmatmul.mubr.bf16.gmra.mrb[0].mxu0 %v932
        %v1022 = vpop.f32.mrb[0].mxu0
        %v1023 = vadd.f32 0.0, %v1022
        %v1024 = vpop.f32.mrb[0].mxu0
        %v1025 = vpop.f32.mrb[0].mxu0
        %v1026 = vadd.f32 0.0, %v1025
        %v1027 = vpop.f32.mrb[0].mxu0
        %1028 = vmatprep.mubr.bf16.mxu0 0
        %1029 = vmatmul.mubr.bf16.gmra.mrb[0].mxu0 %v935
        %v1030 = vpop.f32.mrb[0].mxu0
        %v1031 = vadd.f32 0.0, %v1030
        %v1032 = vpop.f32.mrb[0].mxu0
        %v1033 = vpop.f32.mrb[0].mxu0
        %v1034 = vadd.f32 0.0, %v1033
        %v1035 = vpop.f32.mrb[0].mxu0
        %1036 = vdwg.mxu0
        %v1037 = vadd.f32 %v818, %v975
        %v1038 = vadd.f32 %v819, %v978
        %v1039 = vadd.f32 %v820, %v983
        %v1040 = vadd.f32 %v821, %v986
        %v1041 = vadd.f32 %v822, %v991
        %v1042 = vadd.f32 %v823, %v994
        %v1043 = vadd.f32 %v824, %v999
        %v1044 = vadd.f32 %v825, %v1002
        %v1045 = vadd.f32 %v826, %v1007
        %v1046 = vadd.f32 %v827, %v1010
        %v1047 = vadd.f32 %v828, %v1015
        %v1048 = vadd.f32 %v829, %v1018
        %v1049 = vadd.f32 %v830, %v1023
        %v1050 = vadd.f32 %v831, %v1026
        %v1051 = vadd.f32 %v832, %v1031
        %v1052 = vadd.f32 %v833, %v1034
        %v1053 = vld [vmem:[%s252 + $0x48] sm:$0x3]
        %s1054 = scalar_lea.vmem [#allocation5], 8
        %v1055 = vld [vmem:[%s1054] sm:$0x3]
        %v1057 = vunpack.c.l.b16 %v1053
        %v1058 = vpack.c.b16 %v1057, %v1057
        %vm1059 = vsmask.f32 6400
        %v1061 = vshrl.u32 %v887, 16
        %v1063 = vrot.slane %v1061, 1
        %v1064 = vshll.u32 %v887, 16
        %v1066 = vrot.slane %v1064, 2
        %v1067 = vor.u32 %v1063, %v1066
        %v1069 = vshrl.u32 %v888, 16
        %v1071 = vrot.slane %v1069, 1
        %v1072 = vshll.u32 %v888, 16
        %v1074 = vrot.slane %v1072, 2
        %v1075 = vor.u32 %v1071, %v1074
        %v1076 = vsel %vm1059, %v1067, %v1075
        %v1078 = vshrl.u32 %v889, 16
        %v1080 = vrot.slane %v1078, 1
        %v1081 = vshll.u32 %v889, 16
        %v1083 = vrot.slane %v1081, 2
        %v1084 = vor.u32 %v1080, %v1083
        %v1085 = vsel %vm1059, %v1075, %v1084
        %v1087 = vshrl.u32 %v890, 16
        %v1089 = vrot.slane %v1087, 1
        %v1090 = vshll.u32 %v890, 16
        %v1092 = vrot.slane %v1090, 2
        %v1093 = vor.u32 %v1089, %v1092
        %v1094 = vsel %vm1059, %v1084, %v1093
        %v1096 = vshrl.u32 %v891, 16
        %v1098 = vrot.slane %v1096, 1
        %v1099 = vshll.u32 %v891, 16
        %v1101 = vrot.slane %v1099, 2
        %v1102 = vor.u32 %v1098, %v1101
        %v1103 = vsel %vm1059, %v1093, %v1102
        %v1105 = vshrl.u32 %v892, 16
        %v1107 = vrot.slane %v1105, 1
        %v1108 = vshll.u32 %v892, 16
        %v1110 = vrot.slane %v1108, 2
        %v1111 = vor.u32 %v1107, %v1110
        %v1112 = vsel %vm1059, %v1102, %v1111
        %v1114 = vshrl.u32 %v893, 16
        %v1116 = vrot.slane %v1114, 1
        %v1117 = vshll.u32 %v893, 16
        %v1119 = vrot.slane %v1117, 2
        %v1120 = vor.u32 %v1116, %v1119
        %v1121 = vsel %vm1059, %v1111, %v1120
        %v1123 = vshrl.u32 %v894, 16
        %v1125 = vrot.slane %v1123, 1
        %v1126 = vshll.u32 %v894, 16
        %v1128 = vrot.slane %v1126, 2
        %v1129 = vor.u32 %v1125, %v1128
        %v1130 = vsel %vm1059, %v1120, %v1129
        %v1132 = vshrl.u32 %v1058, 16
        %v1134 = vrot.slane %v1132, 1
        %v1135 = vshll.u32 %v1058, 16
        %v1137 = vrot.slane %v1135, 2
        %v1138 = vor.u32 %v1134, %v1137
        %v1139 = vsel %vm1059, %v1129, %v1138
        %v1141 = vsel %vm428, %v1076, 0
        %v1144 = vsel %vm428, %v1085, 0
        %v1147 = vsel %vm428, %v1094, 0
        %v1150 = vsel %vm428, %v1103, 0
        %v1153 = vsel %vm428, %v1112, 0
        %v1156 = vsel %vm428, %v1121, 0
        %v1159 = vsel %vm428, %v1130, 0
        %v1162 = vsel %vm428, %v1139, 0
        %v1165 = vsel %vm453, %v1055, 0
        %1167 = vmatprep.subr.bf16.mxu0 0
        %1168 = vmatpush1.bf16.msra.mxu0 %v1165
        %1169 = vmatprep.subr.bf16.mxu0 0
        %1170 = vmatpush1.bf16.msra.mxu0 0
        %1171 = vmatprep.subr.bf16.mxu0 0
        %1172 = vmatpush1.bf16.msra.mxu0 0
        %1173 = vmatprep.subr.bf16.mxu0 0
        %1174 = vmatpush1.bf16.msra.mxu0 0
        %1175 = vmatprep.subr.bf16.mxu0 0
        %1176 = vmatpush1.bf16.msra.mxu0 0
        %1177 = vmatprep.subr.bf16.mxu0 0
        %1178 = vmatpush1.bf16.msra.mxu0 0
        %1179 = vmatprep.subr.bf16.mxu0 0
        %1180 = vmatpush1.bf16.msra.mxu0 0
        %1181 = vmatprep.subr.bf16.mxu0 0
        %1182 = vmatpush1.bf16.msra.mxu0 0
        %1183 = vmatprep.subr.bf16.mxu0 0
        %1184 = vmatpush1.bf16.msra.mxu0 0
        %1185 = vmatprep.subr.bf16.mxu0 0
        %1186 = vmatpush1.bf16.msra.mxu0 0
        %1187 = vmatprep.subr.bf16.mxu0 0
        %1188 = vmatpush1.bf16.msra.mxu0 0
        %1189 = vmatprep.subr.bf16.mxu0 0
        %1190 = vmatpush1.bf16.msra.mxu0 0
        %1191 = vmatprep.subr.bf16.mxu0 0
        %1192 = vmatpush1.bf16.msra.mxu0 0
        %1193 = vmatprep.subr.bf16.mxu0 0
        %1194 = vmatpush1.bf16.msra.mxu0 0
        %1195 = vmatprep.subr.bf16.mxu0 0
        %1196 = vmatpush1.bf16.msra.mxu0 0
        %1197 = vmatprep.subr.bf16.mxu0 0
        %1198 = vmatpush1.bf16.msra.mxu0 0
        %1199 = vmatprep.mubr.bf16.mxu0 0
        %1200 = vmatmul.mubr.bf16.gmra.mrb[0].mxu0 %v1141
        %v1201 = vpop.f32.mrb[0].mxu0
        %v1202 = vadd.f32 0.0, %v1201
        %v1203 = vpop.f32.mrb[0].mxu0
        %v1204 = vpop.f32.mrb[0].mxu0
        %v1205 = vadd.f32 0.0, %v1204
        %v1206 = vpop.f32.mrb[0].mxu0
        %1207 = vmatprep.mubr.bf16.mxu0 0
        %1208 = vmatmul.mubr.bf16.gmra.mrb[0].mxu0 %v1144
        %v1209 = vpop.f32.mrb[0].mxu0
        %v1210 = vadd.f32 0.0, %v1209
        %v1211 = vpop.f32.mrb[0].mxu0
        %v1212 = vpop.f32.mrb[0].mxu0
        %v1213 = vadd.f32 0.0, %v1212
        %v1214 = vpop.f32.mrb[0].mxu0
        %1215 = vmatprep.mubr.bf16.mxu0 0
        %1216 = vmatmul.mubr.bf16.gmra.mrb[0].mxu0 %v1147
        %v1217 = vpop.f32.mrb[0].mxu0
        %v1218 = vadd.f32 0.0, %v1217
        %v1219 = vpop.f32.mrb[0].mxu0
        %v1220 = vpop.f32.mrb[0].mxu0
        %v1221 = vadd.f32 0.0, %v1220
        %v1222 = vpop.f32.mrb[0].mxu0
        %1223 = vmatprep.mubr.bf16.mxu0 0
        %1224 = vmatmul.mubr.bf16.gmra.mrb[0].mxu0 %v1150
        %v1225 = vpop.f32.mrb[0].mxu0
        %v1226 = vadd.f32 0.0, %v1225
        %v1227 = vpop.f32.mrb[0].mxu0
        %v1228 = vpop.f32.mrb[0].mxu0
        %v1229 = vadd.f32 0.0, %v1228
        %v1230 = vpop.f32.mrb[0].mxu0
        %1231 = vmatprep.mubr.bf16.mxu0 0
        %1232 = vmatmul.mubr.bf16.gmra.mrb[0].mxu0 %v1153
        %v1233 = vpop.f32.mrb[0].mxu0
        %v1234 = vadd.f32 0.0, %v1233
        %v1235 = vpop.f32.mrb[0].mxu0
        %v1236 = vpop.f32.mrb[0].mxu0
        %v1237 = vadd.f32 0.0, %v1236
        %v1238 = vpop.f32.mrb[0].mxu0
        %1239 = vmatprep.mubr.bf16.mxu0 0
        %1240 = vmatmul.mubr.bf16.gmra.mrb[0].mxu0 %v1156
        %v1241 = vpop.f32.mrb[0].mxu0
        %v1242 = vadd.f32 0.0, %v1241
        %v1243 = vpop.f32.mrb[0].mxu0
        %v1244 = vpop.f32.mrb[0].mxu0
        %v1245 = vadd.f32 0.0, %v1244
        %v1246 = vpop.f32.mrb[0].mxu0
        %1247 = vmatprep.mubr.bf16.mxu0 0
        %1248 = vmatmul.mubr.bf16.gmra.mrb[0].mxu0 %v1159
        %v1249 = vpop.f32.mrb[0].mxu0
        %v1250 = vadd.f32 0.0, %v1249
        %v1251 = vpop.f32.mrb[0].mxu0
        %v1252 = vpop.f32.mrb[0].mxu0
        %v1253 = vadd.f32 0.0, %v1252
        %v1254 = vpop.f32.mrb[0].mxu0
        %1255 = vmatprep.mubr.bf16.mxu0 0
        %1256 = vmatmul.mubr.bf16.gmra.mrb[0].mxu0 %v1162
        %v1257 = vpop.f32.mrb[0].mxu0
        %v1258 = vadd.f32 0.0, %v1257
        %v1259 = vpop.f32.mrb[0].mxu0
        %v1260 = vpop.f32.mrb[0].mxu0
        %v1261 = vadd.f32 0.0, %v1260
        %v1262 = vpop.f32.mrb[0].mxu0
        %1263 = vdwg.mxu0
        %v1264 = vadd.f32 %v1037, %v1202
        %v1265 = vadd.f32 %v1038, %v1205
        %v1266 = vadd.f32 %v1039, %v1210
        %v1267 = vadd.f32 %v1040, %v1213
        %v1268 = vadd.f32 %v1041, %v1218
        %v1269 = vadd.f32 %v1042, %v1221
        %v1270 = vadd.f32 %v1043, %v1226
        %v1271 = vadd.f32 %v1044, %v1229
        %v1272 = vadd.f32 %v1045, %v1234
        %v1273 = vadd.f32 %v1046, %v1237
        %v1274 = vadd.f32 %v1047, %v1242
        %v1275 = vadd.f32 %v1048, %v1245
        %v1276 = vadd.f32 %v1049, %v1250
        %v1277 = vadd.f32 %v1050, %v1253
        %v1278 = vadd.f32 %v1051, %v1258
        %v1279 = vadd.f32 %v1052, %v1261
        %v1280 = vld [vmem:[%s252 + $0x8] sm:$0xc]
        %s1281 = scalar_lea.vmem [#allocation5], 10
        %v1282 = vld [vmem:[%s1281] sm:$0x3]
        %v1284 = vunpack.c.l.b16 %v1280
        %v1285 = vpack.c.b16 %v871, %v1284
        %vm1286 = vcmask 1045504
        %v1287 = vrot.slane %v1285, 2
        %v1288 = vrot.slane %v888, 2
        %v1289 = vsel %vm1286, %v1287, %v1288
        %v1290 = vrot.slane %v889, 2
        %v1291 = vsel %vm1286, %v1288, %v1290
        %v1292 = vrot.slane %v890, 2
        %v1293 = vsel %vm1286, %v1290, %v1292
        %v1294 = vrot.slane %v891, 2
        %v1295 = vsel %vm1286, %v1292, %v1294
        %v1296 = vrot.slane %v892, 2
        %v1297 = vsel %vm1286, %v1294, %v1296
        %v1298 = vrot.slane %v893, 2
        %v1299 = vsel %vm1286, %v1296, %v1298
        %v1300 = vrot.slane %v894, 2
        %v1301 = vsel %vm1286, %v1298, %v1300
        %v1302 = vrot.slane %v1058, 2
        %v1303 = vsel %vm1286, %v1300, %v1302
        %v1305 = vsel %vm428, %v1289, 0
        %v1308 = vsel %vm428, %v1291, 0
        %v1311 = vsel %vm428, %v1293, 0
        %v1314 = vsel %vm428, %v1295, 0
        %v1317 = vsel %vm428, %v1297, 0
        %v1320 = vsel %vm428, %v1299, 0
        %v1323 = vsel %vm428, %v1301, 0
        %v1326 = vsel %vm428, %v1303, 0
        %v1329 = vsel %vm453, %v1282, 0
        %1331 = vmatprep.subr.bf16.mxu0 0
        %1332 = vmatpush1.bf16.msra.mxu0 %v1329
        %1333 = vmatprep.subr.bf16.mxu0 0
        %1334 = vmatpush1.bf16.msra.mxu0 0
        %1335 = vmatprep.subr.bf16.mxu0 0
        %1336 = vmatpush1.bf16.msra.mxu0 0
        %1337 = vmatprep.subr.bf16.mxu0 0
        %1338 = vmatpush1.bf16.msra.mxu0 0
        %1339 = vmatprep.subr.bf16.mxu0 0
        %1340 = vmatpush1.bf16.msra.mxu0 0
        %1341 = vmatprep.subr.bf16.mxu0 0
        %1342 = vmatpush1.bf16.msra.mxu0 0
        %1343 = vmatprep.subr.bf16.mxu0 0
        %1344 = vmatpush1.bf16.msra.mxu0 0
        %1345 = vmatprep.subr.bf16.mxu0 0
        %1346 = vmatpush1.bf16.msra.mxu0 0
        %1347 = vmatprep.subr.bf16.mxu0 0
        %1348 = vmatpush1.bf16.msra.mxu0 0
        %1349 = vmatprep.subr.bf16.mxu0 0
        %1350 = vmatpush1.bf16.msra.mxu0 0
        %1351 = vmatprep.subr.bf16.mxu0 0
        %1352 = vmatpush1.bf16.msra.mxu0 0
        %1353 = vmatprep.subr.bf16.mxu0 0
        %1354 = vmatpush1.bf16.msra.mxu0 0
        %1355 = vmatprep.subr.bf16.mxu0 0
        %1356 = vmatpush1.bf16.msra.mxu0 0
        %1357 = vmatprep.subr.bf16.mxu0 0
        %1358 = vmatpush1.bf16.msra.mxu0 0
        %1359 = vmatprep.subr.bf16.mxu0 0
        %1360 = vmatpush1.bf16.msra.mxu0 0
        %1361 = vmatprep.subr.bf16.mxu0 0
        %1362 = vmatpush1.bf16.msra.mxu0 0
        %1363 = vmatprep.mubr.bf16.mxu0 0
        %1364 = vmatmul.mubr.bf16.gmra.mrb[0].mxu0 %v1305
        %v1365 = vpop.f32.mrb[0].mxu0
        %v1366 = vadd.f32 0.0, %v1365
        %v1367 = vpop.f32.mrb[0].mxu0
        %v1368 = vpop.f32.mrb[0].mxu0
        %v1369 = vadd.f32 0.0, %v1368
        %v1370 = vpop.f32.mrb[0].mxu0
        %1371 = vmatprep.mubr.bf16.mxu0 0
        %1372 = vmatmul.mubr.bf16.gmra.mrb[0].mxu0 %v1308
        %v1373 = vpop.f32.mrb[0].mxu0
        %v1374 = vadd.f32 0.0, %v1373
        %v1375 = vpop.f32.mrb[0].mxu0
        %v1376 = vpop.f32.mrb[0].mxu0
        %v1377 = vadd.f32 0.0, %v1376
        %v1378 = vpop.f32.mrb[0].mxu0
        %1379 = vmatprep.mubr.bf16.mxu0 0
        %1380 = vmatmul.mubr.bf16.gmra.mrb[0].mxu0 %v1311
        %v1381 = vpop.f32.mrb[0].mxu0
        %v1382 = vadd.f32 0.0, %v1381
        %v1383 = vpop.f32.mrb[0].mxu0
        %v1384 = vpop.f32.mrb[0].mxu0
        %v1385 = vadd.f32 0.0, %v1384
        %v1386 = vpop.f32.mrb[0].mxu0
        %1387 = vmatprep.mubr.bf16.mxu0 0
        %1388 = vmatmul.mubr.bf16.gmra.mrb[0].mxu0 %v1314
        %v1389 = vpop.f32.mrb[0].mxu0
        %v1390 = vadd.f32 0.0, %v1389
        %v1391 = vpop.f32.mrb[0].mxu0
        %v1392 = vpop.f32.mrb[0].mxu0
        %v1393 = vadd.f32 0.0, %v1392
        %v1394 = vpop.f32.mrb[0].mxu0
        %1395 = vmatprep.mubr.bf16.mxu0 0
        %1396 = vmatmul.mubr.bf16.gmra.mrb[0].mxu0 %v1317
        %v1397 = vpop.f32.mrb[0].mxu0
        %v1398 = vadd.f32 0.0, %v1397
        %v1399 = vpop.f32.mrb[0].mxu0
        %v1400 = vpop.f32.mrb[0].mxu0
        %v1401 = vadd.f32 0.0, %v1400
        %v1402 = vpop.f32.mrb[0].mxu0
        %1403 = vmatprep.mubr.bf16.mxu0 0
        %1404 = vmatmul.mubr.bf16.gmra.mrb[0].mxu0 %v1320
        %v1405 = vpop.f32.mrb[0].mxu0
        %v1406 = vadd.f32 0.0, %v1405
        %v1407 = vpop.f32.mrb[0].mxu0
        %v1408 = vpop.f32.mrb[0].mxu0
        %v1409 = vadd.f32 0.0, %v1408
        %v1410 = vpop.f32.mrb[0].mxu0
        %1411 = vmatprep.mubr.bf16.mxu0 0
        %1412 = vmatmul.mubr.bf16.gmra.mrb[0].mxu0 %v1323
        %v1413 = vpop.f32.mrb[0].mxu0
        %v1414 = vadd.f32 0.0, %v1413
        %v1415 = vpop.f32.mrb[0].mxu0
        %v1416 = vpop.f32.mrb[0].mxu0
        %v1417 = vadd.f32 0.0, %v1416
        %v1418 = vpop.f32.mrb[0].mxu0
        %1419 = vmatprep.mubr.bf16.mxu0 0
        %1420 = vmatmul.mubr.bf16.gmra.mrb[0].mxu0 %v1326
        %v1421 = vpop.f32.mrb[0].mxu0
        %v1422 = vadd.f32 0.0, %v1421
        %v1423 = vpop.f32.mrb[0].mxu0
        %v1424 = vpop.f32.mrb[0].mxu0
        %v1425 = vadd.f32 0.0, %v1424
        %v1426 = vpop.f32.mrb[0].mxu0
        %1427 = vdwg.mxu0
        %v1428 = vadd.f32 %v1264, %v1366
        %v1429 = vadd.f32 %v1265, %v1369
        %v1430 = vadd.f32 %v1266, %v1374
        %v1431 = vadd.f32 %v1267, %v1377
        %v1432 = vadd.f32 %v1268, %v1382
        %v1433 = vadd.f32 %v1269, %v1385
        %v1434 = vadd.f32 %v1270, %v1390
        %v1435 = vadd.f32 %v1271, %v1393
        %v1436 = vadd.f32 %v1272, %v1398
        %v1437 = vadd.f32 %v1273, %v1401
        %v1438 = vadd.f32 %v1274, %v1406
        %v1439 = vadd.f32 %v1275, %v1409
        %v1440 = vadd.f32 %v1276, %v1414
        %v1441 = vadd.f32 %v1277, %v1417
        %v1442 = vadd.f32 %v1278, %v1422
        %v1443 = vadd.f32 %v1279, %v1425
        %v1444 = vld [vmem:[%s252 + $0x10] sm:$0xc]
        %v1445 = vld [vmem:[%s252 + $0x14] sm:$0xf]
        %v1446 = vld [vmem:[%s252 + $0x18] sm:$0xf]
        %v1447 = vld [vmem:[%s252 + $0x1c] sm:$0xf]
        %v1448 = vld [vmem:[%s252 + $0x20] sm:$0xf]
        %v1449 = vld [vmem:[%s252 + $0x24] sm:$0xf]
        %v1450 = vld [vmem:[%s252 + $0x28] sm:$0xf]
        %v1451 = vld [vmem:[%s252 + $0x2c] sm:$0xf]
        %v1452 = vld [vmem:[%s252 + $0x30] sm:$0xf]
        %v1453 = vld [vmem:[%s252 + $0x34] sm:$0xf]
        %v1454 = vld [vmem:[%s252 + $0x38] sm:$0xf]
        %v1455 = vld [vmem:[%s252 + $0x3c] sm:$0xf]
        %v1456 = vld [vmem:[%s252 + $0x40] sm:$0xf]
        %v1457 = vld [vmem:[%s252 + $0x44] sm:$0xf]
        %v1458 = vld [vmem:[%s252 + $0x48] sm:$0xf]
        %v1459 = vld [vmem:[%s252 + $0x4c] sm:$0xf]
        %v1460 = vld [vmem:[%s252 + $0x50] sm:$0x3]
        %s1461 = scalar_lea.vmem [#allocation5], 12
        %v1462 = vld [vmem:[%s1461] sm:$0x3]
        %v1480 = vunpack.c.l.b16 %v1444
        %v1481 = vunpack.c.l.b16 %v1445
        %v1482 = vunpack.c.l.b16 %v1446
        %v1483 = vunpack.c.l.b16 %v1447
        %v1484 = vunpack.c.l.b16 %v1448
        %v1485 = vunpack.c.l.b16 %v1449
        %v1486 = vunpack.c.l.b16 %v1450
        %v1487 = vunpack.c.l.b16 %v1451
        %v1488 = vunpack.c.l.b16 %v1452
        %v1489 = vunpack.c.l.b16 %v1453
        %v1490 = vunpack.c.l.b16 %v1454
        %v1491 = vunpack.c.l.b16 %v1455
        %v1492 = vunpack.c.l.b16 %v1456
        %v1493 = vunpack.c.l.b16 %v1457
        %v1494 = vunpack.c.l.b16 %v1458
        %v1495 = vunpack.c.l.b16 %v1459
        %v1496 = vunpack.c.l.b16 %v1460
        %v1497 = vpack.c.b16 %v1481, %v1480
        %v1498 = vpack.c.b16 %v1483, %v1482
        %v1499 = vpack.c.b16 %v1485, %v1484
        %v1500 = vpack.c.b16 %v1487, %v1486
        %v1501 = vpack.c.b16 %v1489, %v1488
        %v1502 = vpack.c.b16 %v1491, %v1490
        %v1503 = vpack.c.b16 %v1493, %v1492
        %v1504 = vpack.c.b16 %v1495, %v1494
        %v1505 = vpack.c.b16 %v1496, %v1496
        %v1506 = vrot.slane %v1497, 2
        %v1507 = vrot.slane %v1498, 2
        %v1508 = vsel %vm1286, %v1506, %v1507
        %v1509 = vrot.slane %v1499, 2
        %v1510 = vsel %vm1286, %v1507, %v1509
        %v1511 = vrot.slane %v1500, 2
        %v1512 = vsel %vm1286, %v1509, %v1511
        %v1513 = vrot.slane %v1501, 2
        %v1514 = vsel %vm1286, %v1511, %v1513
        %v1515 = vrot.slane %v1502, 2
        %v1516 = vsel %vm1286, %v1513, %v1515
        %v1517 = vrot.slane %v1503, 2
        %v1518 = vsel %vm1286, %v1515, %v1517
        %v1519 = vrot.slane %v1504, 2
        %v1520 = vsel %vm1286, %v1517, %v1519
        %v1521 = vrot.slane %v1505, 2
        %v1522 = vsel %vm1286, %v1519, %v1521
        %v1524 = vsel %vm428, %v1508, 0
        %v1527 = vsel %vm428, %v1510, 0
        %v1530 = vsel %vm428, %v1512, 0
        %v1533 = vsel %vm428, %v1514, 0
        %v1536 = vsel %vm428, %v1516, 0
        %v1539 = vsel %vm428, %v1518, 0
        %v1542 = vsel %vm428, %v1520, 0
        %v1545 = vsel %vm428, %v1522, 0
        %v1548 = vsel %vm453, %v1462, 0
        %1550 = vmatprep.subr.bf16.mxu0 0
        %1551 = vmatpush1.bf16.msra.mxu0 %v1548
        %1552 = vmatprep.subr.bf16.mxu0 0
        %1553 = vmatpush1.bf16.msra.mxu0 0
        %1554 = vmatprep.subr.bf16.mxu0 0
        %1555 = vmatpush1.bf16.msra.mxu0 0
        %1556 = vmatprep.subr.bf16.mxu0 0
        %1557 = vmatpush1.bf16.msra.mxu0 0
        %1558 = vmatprep.subr.bf16.mxu0 0
        %1559 = vmatpush1.bf16.msra.mxu0 0
        %1560 = vmatprep.subr.bf16.mxu0 0
        %1561 = vmatpush1.bf16.msra.mxu0 0
        %1562 = vmatprep.subr.bf16.mxu0 0
        %1563 = vmatpush1.bf16.msra.mxu0 0
        %1564 = vmatprep.subr.bf16.mxu0 0
        %1565 = vmatpush1.bf16.msra.mxu0 0
        %1566 = vmatprep.subr.bf16.mxu0 0
        %1567 = vmatpush1.bf16.msra.mxu0 0
        %1568 = vmatprep.subr.bf16.mxu0 0
        %1569 = vmatpush1.bf16.msra.mxu0 0
        %1570 = vmatprep.subr.bf16.mxu0 0
        %1571 = vmatpush1.bf16.msra.mxu0 0
        %1572 = vmatprep.subr.bf16.mxu0 0
        %1573 = vmatpush1.bf16.msra.mxu0 0
        %1574 = vmatprep.subr.bf16.mxu0 0
        %1575 = vmatpush1.bf16.msra.mxu0 0
        %1576 = vmatprep.subr.bf16.mxu0 0
        %1577 = vmatpush1.bf16.msra.mxu0 0
        %1578 = vmatprep.subr.bf16.mxu0 0
        %1579 = vmatpush1.bf16.msra.mxu0 0
        %1580 = vmatprep.subr.bf16.mxu0 0
        %1581 = vmatpush1.bf16.msra.mxu0 0
        %1582 = vmatprep.mubr.bf16.mxu0 0
        %1583 = vmatmul.mubr.bf16.gmra.mrb[0].mxu0 %v1524
        %v1584 = vpop.f32.mrb[0].mxu0
        %v1585 = vadd.f32 0.0, %v1584
        %v1586 = vpop.f32.mrb[0].mxu0
        %v1587 = vpop.f32.mrb[0].mxu0
        %v1588 = vadd.f32 0.0, %v1587
        %v1589 = vpop.f32.mrb[0].mxu0
        %1590 = vmatprep.mubr.bf16.mxu0 0
        %1591 = vmatmul.mubr.bf16.gmra.mrb[0].mxu0 %v1527
        %v1592 = vpop.f32.mrb[0].mxu0
        %v1593 = vadd.f32 0.0, %v1592
        %v1594 = vpop.f32.mrb[0].mxu0
        %v1595 = vpop.f32.mrb[0].mxu0
        %v1596 = vadd.f32 0.0, %v1595
        %v1597 = vpop.f32.mrb[0].mxu0
        %1598 = vmatprep.mubr.bf16.mxu0 0
        %1599 = vmatmul.mubr.bf16.gmra.mrb[0].mxu0 %v1530
        %v1600 = vpop.f32.mrb[0].mxu0
        %v1601 = vadd.f32 0.0, %v1600
        %v1602 = vpop.f32.mrb[0].mxu0
        %v1603 = vpop.f32.mrb[0].mxu0
        %v1604 = vadd.f32 0.0, %v1603
        %v1605 = vpop.f32.mrb[0].mxu0
        %1606 = vmatprep.mubr.bf16.mxu0 0
        %1607 = vmatmul.mubr.bf16.gmra.mrb[0].mxu0 %v1533
        %v1608 = vpop.f32.mrb[0].mxu0
        %v1609 = vadd.f32 0.0, %v1608
        %v1610 = vpop.f32.mrb[0].mxu0
        %v1611 = vpop.f32.mrb[0].mxu0
        %v1612 = vadd.f32 0.0, %v1611
        %v1613 = vpop.f32.mrb[0].mxu0
        %1614 = vmatprep.mubr.bf16.mxu0 0
        %1615 = vmatmul.mubr.bf16.gmra.mrb[0].mxu0 %v1536
        %v1616 = vpop.f32.mrb[0].mxu0
        %v1617 = vadd.f32 0.0, %v1616
        %v1618 = vpop.f32.mrb[0].mxu0
        %v1619 = vpop.f32.mrb[0].mxu0
        %v1620 = vadd.f32 0.0, %v1619
        %v1621 = vpop.f32.mrb[0].mxu0
        %1622 = vmatprep.mubr.bf16.mxu0 0
        %1623 = vmatmul.mubr.bf16.gmra.mrb[0].mxu0 %v1539
        %v1624 = vpop.f32.mrb[0].mxu0
        %v1625 = vadd.f32 0.0, %v1624
        %v1626 = vpop.f32.mrb[0].mxu0
        %v1627 = vpop.f32.mrb[0].mxu0
        %v1628 = vadd.f32 0.0, %v1627
        %v1629 = vpop.f32.mrb[0].mxu0
        %1630 = vmatprep.mubr.bf16.mxu0 0
        %1631 = vmatmul.mubr.bf16.gmra.mrb[0].mxu0 %v1542
        %v1632 = vpop.f32.mrb[0].mxu0
        %v1633 = vadd.f32 0.0, %v1632
        %v1634 = vpop.f32.mrb[0].mxu0
        %v1635 = vpop.f32.mrb[0].mxu0
        %v1636 = vadd.f32 0.0, %v1635
        %v1637 = vpop.f32.mrb[0].mxu0
        %1638 = vmatprep.mubr.bf16.mxu0 0
        %1639 = vmatmul.mubr.bf16.gmra.mrb[0].mxu0 %v1545
        %v1640 = vpop.f32.mrb[0].mxu0
        %v1641 = vadd.f32 0.0, %v1640
        %v1642 = vpop.f32.mrb[0].mxu0
        %v1643 = vpop.f32.mrb[0].mxu0
        %v1644 = vadd.f32 0.0, %v1643
        %v1645 = vpop.f32.mrb[0].mxu0
        %1646 = vdwg.mxu0
        %v1647 = vadd.f32 %v1428, %v1585
        %v1648 = vadd.f32 %v1429, %v1588
        %v1649 = vadd.f32 %v1430, %v1593
        %v1650 = vadd.f32 %v1431, %v1596
        %v1651 = vadd.f32 %v1432, %v1601
        %v1652 = vadd.f32 %v1433, %v1604
        %v1653 = vadd.f32 %v1434, %v1609
        %v1654 = vadd.f32 %v1435, %v1612
        %v1655 = vadd.f32 %v1436, %v1617
        %v1656 = vadd.f32 %v1437, %v1620
        %v1657 = vadd.f32 %v1438, %v1625
        %v1658 = vadd.f32 %v1439, %v1628
        %v1659 = vadd.f32 %v1440, %v1633
        %v1660 = vadd.f32 %v1441, %v1636
        %v1661 = vadd.f32 %v1442, %v1641
        %v1662 = vadd.f32 %v1443, %v1644
        %v1663 = vld [vmem:[%s252 + $0x50] sm:$0x7]
        %s1664 = scalar_lea.vmem [#allocation5], 14
        %v1665 = vld [vmem:[%s1664] sm:$0x3]
        %v1667 = vunpack.c.l.b16 %v1663
        %v1668 = vpack.c.b16 %v1667, %v1667
        %vm1669 = vsmask.f32 5376
        %v1671 = vshrl.u32 %v1497, 16
        %v1673 = vrot.slane %v1671, 2
        %v1674 = vshll.u32 %v1497, 16
        %v1676 = vrot.slane %v1674, 3
        %v1677 = vor.u32 %v1673, %v1676
        %v1679 = vshrl.u32 %v1498, 16
        %v1681 = vrot.slane %v1679, 2
        %v1682 = vshll.u32 %v1498, 16
        %v1684 = vrot.slane %v1682, 3
        %v1685 = vor.u32 %v1681, %v1684
        %v1686 = vsel %vm1669, %v1677, %v1685
        %v1688 = vshrl.u32 %v1499, 16
        %v1690 = vrot.slane %v1688, 2
        %v1691 = vshll.u32 %v1499, 16
        %v1693 = vrot.slane %v1691, 3
        %v1694 = vor.u32 %v1690, %v1693
        %v1695 = vsel %vm1669, %v1685, %v1694
        %v1697 = vshrl.u32 %v1500, 16
        %v1699 = vrot.slane %v1697, 2
        %v1700 = vshll.u32 %v1500, 16
        %v1702 = vrot.slane %v1700, 3
        %v1703 = vor.u32 %v1699, %v1702
        %v1704 = vsel %vm1669, %v1694, %v1703
        %v1706 = vshrl.u32 %v1501, 16
        %v1708 = vrot.slane %v1706, 2
        %v1709 = vshll.u32 %v1501, 16
        %v1711 = vrot.slane %v1709, 3
        %v1712 = vor.u32 %v1708, %v1711
        %v1713 = vsel %vm1669, %v1703, %v1712
        %v1715 = vshrl.u32 %v1502, 16
        %v1717 = vrot.slane %v1715, 2
        %v1718 = vshll.u32 %v1502, 16
        %v1720 = vrot.slane %v1718, 3
        %v1721 = vor.u32 %v1717, %v1720
        %v1722 = vsel %vm1669, %v1712, %v1721
        %v1724 = vshrl.u32 %v1503, 16
        %v1726 = vrot.slane %v1724, 2
        %v1727 = vshll.u32 %v1503, 16
        %v1729 = vrot.slane %v1727, 3
        %v1730 = vor.u32 %v1726, %v1729
        %v1731 = vsel %vm1669, %v1721, %v1730
        %v1733 = vshrl.u32 %v1504, 16
        %v1735 = vrot.slane %v1733, 2
        %v1736 = vshll.u32 %v1504, 16
        %v1738 = vrot.slane %v1736, 3
        %v1739 = vor.u32 %v1735, %v1738
        %v1740 = vsel %vm1669, %v1730, %v1739
        %v1742 = vshrl.u32 %v1668, 16
        %v1744 = vrot.slane %v1742, 2
        %v1745 = vshll.u32 %v1668, 16
        %v1747 = vrot.slane %v1745, 3
        %v1748 = vor.u32 %v1744, %v1747
        %v1749 = vsel %vm1669, %v1739, %v1748
        %v1751 = vsel %vm428, %v1686, 0
        %v1754 = vsel %vm428, %v1695, 0
        %v1757 = vsel %vm428, %v1704, 0
        %v1760 = vsel %vm428, %v1713, 0
        %v1763 = vsel %vm428, %v1722, 0
        %v1766 = vsel %vm428, %v1731, 0
        %v1769 = vsel %vm428, %v1740, 0
        %v1772 = vsel %vm428, %v1749, 0
        %v1775 = vsel %vm453, %v1665, 0
        %1777 = vmatprep.subr.bf16.mxu0 0
        %1778 = vmatpush1.bf16.msra.mxu0 %v1775
        %1779 = vmatprep.subr.bf16.mxu0 0
        %1780 = vmatpush1.bf16.msra.mxu0 0
        %1781 = vmatprep.subr.bf16.mxu0 0
        %1782 = vmatpush1.bf16.msra.mxu0 0
        %1783 = vmatprep.subr.bf16.mxu0 0
        %1784 = vmatpush1.bf16.msra.mxu0 0
        %1785 = vmatprep.subr.bf16.mxu0 0
        %1786 = vmatpush1.bf16.msra.mxu0 0
        %1787 = vmatprep.subr.bf16.mxu0 0
        %1788 = vmatpush1.bf16.msra.mxu0 0
        %1789 = vmatprep.subr.bf16.mxu0 0
        %1790 = vmatpush1.bf16.msra.mxu0 0
        %1791 = vmatprep.subr.bf16.mxu0 0
        %1792 = vmatpush1.bf16.msra.mxu0 0
        %1793 = vmatprep.subr.bf16.mxu0 0
        %1794 = vmatpush1.bf16.msra.mxu0 0
        %1795 = vmatprep.subr.bf16.mxu0 0
        %1796 = vmatpush1.bf16.msra.mxu0 0
        %1797 = vmatprep.subr.bf16.mxu0 0
        %1798 = vmatpush1.bf16.msra.mxu0 0
        %1799 = vmatprep.subr.bf16.mxu0 0
        %1800 = vmatpush1.bf16.msra.mxu0 0
        %1801 = vmatprep.subr.bf16.mxu0 0
        %1802 = vmatpush1.bf16.msra.mxu0 0
        %1803 = vmatprep.subr.bf16.mxu0 0
        %1804 = vmatpush1.bf16.msra.mxu0 0
        %1805 = vmatprep.subr.bf16.mxu0 0
        %1806 = vmatpush1.bf16.msra.mxu0 0
        %1807 = vmatprep.subr.bf16.mxu0 0
        %1808 = vmatpush1.bf16.msra.mxu0 0
        %1809 = vmatprep.mubr.bf16.mxu0 0
        %1810 = vmatmul.mubr.bf16.gmra.mrb[0].mxu0 %v1751
        %v1811 = vpop.f32.mrb[0].mxu0
        %v1812 = vadd.f32 0.0, %v1811
        %v1813 = vpop.f32.mrb[0].mxu0
        %v1814 = vpop.f32.mrb[0].mxu0
        %v1815 = vadd.f32 0.0, %v1814
        %v1816 = vpop.f32.mrb[0].mxu0
        %1817 = vmatprep.mubr.bf16.mxu0 0
        %1818 = vmatmul.mubr.bf16.gmra.mrb[0].mxu0 %v1754
        %v1819 = vpop.f32.mrb[0].mxu0
        %v1820 = vadd.f32 0.0, %v1819
        %v1821 = vpop.f32.mrb[0].mxu0
        %v1822 = vpop.f32.mrb[0].mxu0
        %v1823 = vadd.f32 0.0, %v1822
        %v1824 = vpop.f32.mrb[0].mxu0
        %1825 = vmatprep.mubr.bf16.mxu0 0
        %1826 = vmatmul.mubr.bf16.gmra.mrb[0].mxu0 %v1757
        %v1827 = vpop.f32.mrb[0].mxu0
        %v1828 = vadd.f32 0.0, %v1827
        %v1829 = vpop.f32.mrb[0].mxu0
        %v1830 = vpop.f32.mrb[0].mxu0
        %v1831 = vadd.f32 0.0, %v1830
        %v1832 = vpop.f32.mrb[0].mxu0
        %1833 = vmatprep.mubr.bf16.mxu0 0
        %1834 = vmatmul.mubr.bf16.gmra.mrb[0].mxu0 %v1760
        %v1835 = vpop.f32.mrb[0].mxu0
        %v1836 = vadd.f32 0.0, %v1835
        %v1837 = vpop.f32.mrb[0].mxu0
        %v1838 = vpop.f32.mrb[0].mxu0
        %v1839 = vadd.f32 0.0, %v1838
        %v1840 = vpop.f32.mrb[0].mxu0
        %1841 = vmatprep.mubr.bf16.mxu0 0
        %1842 = vmatmul.mubr.bf16.gmra.mrb[0].mxu0 %v1763
        %v1843 = vpop.f32.mrb[0].mxu0
        %v1844 = vadd.f32 0.0, %v1843
        %v1845 = vpop.f32.mrb[0].mxu0
        %v1846 = vpop.f32.mrb[0].mxu0
        %v1847 = vadd.f32 0.0, %v1846
        %v1848 = vpop.f32.mrb[0].mxu0
        %1849 = vmatprep.mubr.bf16.mxu0 0
        %1850 = vmatmul.mubr.bf16.gmra.mrb[0].mxu0 %v1766
        %v1851 = vpop.f32.mrb[0].mxu0
        %v1852 = vadd.f32 0.0, %v1851
        %v1853 = vpop.f32.mrb[0].mxu0
        %v1854 = vpop.f32.mrb[0].mxu0
        %v1855 = vadd.f32 0.0, %v1854
        %v1856 = vpop.f32.mrb[0].mxu0
        %1857 = vmatprep.mubr.bf16.mxu0 0
        %1858 = vmatmul.mubr.bf16.gmra.mrb[0].mxu0 %v1769
        %v1859 = vpop.f32.mrb[0].mxu0
        %v1860 = vadd.f32 0.0, %v1859
        %v1861 = vpop.f32.mrb[0].mxu0
        %v1862 = vpop.f32.mrb[0].mxu0
        %v1863 = vadd.f32 0.0, %v1862
        %v1864 = vpop.f32.mrb[0].mxu0
        %1865 = vmatprep.mubr.bf16.mxu0 0
        %1866 = vmatmul.mubr.bf16.gmra.mrb[0].mxu0 %v1772
        %v1867 = vpop.f32.mrb[0].mxu0
        %v1868 = vadd.f32 0.0, %v1867
        %v1869 = vpop.f32.mrb[0].mxu0
        %v1870 = vpop.f32.mrb[0].mxu0
        %v1871 = vadd.f32 0.0, %v1870
        %v1872 = vpop.f32.mrb[0].mxu0
        %1873 = vdwg.mxu0
        %v1874 = vadd.f32 %v1647, %v1812
        %v1875 = vadd.f32 %v1648, %v1815
        %v1876 = vadd.f32 %v1649, %v1820
        %v1877 = vadd.f32 %v1650, %v1823
        %v1878 = vadd.f32 %v1651, %v1828
        %v1879 = vadd.f32 %v1652, %v1831
        %v1880 = vadd.f32 %v1653, %v1836
        %v1881 = vadd.f32 %v1654, %v1839
        %v1882 = vadd.f32 %v1655, %v1844
        %v1883 = vadd.f32 %v1656, %v1847
        %v1884 = vadd.f32 %v1657, %v1852
        %v1885 = vadd.f32 %v1658, %v1855
        %v1886 = vadd.f32 %v1659, %v1860
        %v1887 = vadd.f32 %v1660, %v1863
        %v1888 = vadd.f32 %v1661, %v1868
        %v1889 = vadd.f32 %v1662, %v1871
        %v1890 = vld [vmem:[%s252 + $0x10] sm:$0x8]
        %s1891 = scalar_lea.vmem [#allocation5], 16
        %v1892 = vld [vmem:[%s1891] sm:$0x3]
        %v1894 = vunpack.c.l.b16 %v1890
        %v1895 = vpack.c.b16 %v1481, %v1894
        %vm1896 = vcmask 1044480
        %v1897 = vrot.slane %v1895, 3
        %v1898 = vrot.slane %v1498, 3
        %v1899 = vsel %vm1896, %v1897, %v1898
        %v1900 = vrot.slane %v1499, 3
        %v1901 = vsel %vm1896, %v1898, %v1900
        %v1902 = vrot.slane %v1500, 3
        %v1903 = vsel %vm1896, %v1900, %v1902
        %v1904 = vrot.slane %v1501, 3
        %v1905 = vsel %vm1896, %v1902, %v1904
        %v1906 = vrot.slane %v1502, 3
        %v1907 = vsel %vm1896, %v1904, %v1906
        %v1908 = vrot.slane %v1503, 3
        %v1909 = vsel %vm1896, %v1906, %v1908
        %v1910 = vrot.slane %v1504, 3
        %v1911 = vsel %vm1896, %v1908, %v1910
        %v1912 = vrot.slane %v1668, 3
        %v1913 = vsel %vm1896, %v1910, %v1912
        %v1915 = vsel %vm428, %v1899, 0
        %v1918 = vsel %vm428, %v1901, 0
        %v1921 = vsel %vm428, %v1903, 0
        %v1924 = vsel %vm428, %v1905, 0
        %v1927 = vsel %vm428, %v1907, 0
        %v1930 = vsel %vm428, %v1909, 0
        %v1933 = vsel %vm428, %v1911, 0
        %v1936 = vsel %vm428, %v1913, 0
        %v1939 = vsel %vm453, %v1892, 0
        %1941 = vmatprep.subr.bf16.mxu0 0
        %1942 = vmatpush1.bf16.msra.mxu0 %v1939
        %1943 = vmatprep.subr.bf16.mxu0 0
        %1944 = vmatpush1.bf16.msra.mxu0 0
        %1945 = vmatprep.subr.bf16.mxu0 0
        %1946 = vmatpush1.bf16.msra.mxu0 0
        %1947 = vmatprep.subr.bf16.mxu0 0
        %1948 = vmatpush1.bf16.msra.mxu0 0
        %1949 = vmatprep.subr.bf16.mxu0 0
        %1950 = vmatpush1.bf16.msra.mxu0 0
        %1951 = vmatprep.subr.bf16.mxu0 0
        %1952 = vmatpush1.bf16.msra.mxu0 0
        %1953 = vmatprep.subr.bf16.mxu0 0
        %1954 = vmatpush1.bf16.msra.mxu0 0
        %1955 = vmatprep.subr.bf16.mxu0 0
        %1956 = vmatpush1.bf16.msra.mxu0 0
        %1957 = vmatprep.subr.bf16.mxu0 0
        %1958 = vmatpush1.bf16.msra.mxu0 0
        %1959 = vmatprep.subr.bf16.mxu0 0
        %1960 = vmatpush1.bf16.msra.mxu0 0
        %1961 = vmatprep.subr.bf16.mxu0 0
        %1962 = vmatpush1.bf16.msra.mxu0 0
        %1963 = vmatprep.subr.bf16.mxu0 0
        %1964 = vmatpush1.bf16.msra.mxu0 0
        %1965 = vmatprep.subr.bf16.mxu0 0
        %1966 = vmatpush1.bf16.msra.mxu0 0
        %1967 = vmatprep.subr.bf16.mxu0 0
        %1968 = vmatpush1.bf16.msra.mxu0 0
        %1969 = vmatprep.subr.bf16.mxu0 0
        %1970 = vmatpush1.bf16.msra.mxu0 0
        %1971 = vmatprep.subr.bf16.mxu0 0
        %1972 = vmatpush1.bf16.msra.mxu0 0
        %1973 = vmatprep.mubr.bf16.mxu0 0
        %1974 = vmatmul.mubr.bf16.gmra.mrb[0].mxu0 %v1915
        %v1975 = vpop.f32.mrb[0].mxu0
        %v1976 = vadd.f32 0.0, %v1975
        %v1977 = vpop.f32.mrb[0].mxu0
        %v1978 = vpop.f32.mrb[0].mxu0
        %v1979 = vadd.f32 0.0, %v1978
        %v1980 = vpop.f32.mrb[0].mxu0
        %1981 = vmatprep.mubr.bf16.mxu0 0
        %1982 = vmatmul.mubr.bf16.gmra.mrb[0].mxu0 %v1918
        %v1983 = vpop.f32.mrb[0].mxu0
        %v1984 = vadd.f32 0.0, %v1983
        %v1985 = vpop.f32.mrb[0].mxu0
        %v1986 = vpop.f32.mrb[0].mxu0
        %v1987 = vadd.f32 0.0, %v1986
        %v1988 = vpop.f32.mrb[0].mxu0
        %1989 = vmatprep.mubr.bf16.mxu0 0
        %1990 = vmatmul.mubr.bf16.gmra.mrb[0].mxu0 %v1921
        %v1991 = vpop.f32.mrb[0].mxu0
        %v1992 = vadd.f32 0.0, %v1991
        %v1993 = vpop.f32.mrb[0].mxu0
        %v1994 = vpop.f32.mrb[0].mxu0
        %v1995 = vadd.f32 0.0, %v1994
        %v1996 = vpop.f32.mrb[0].mxu0
        %1997 = vmatprep.mubr.bf16.mxu0 0
        %1998 = vmatmul.mubr.bf16.gmra.mrb[0].mxu0 %v1924
        %v1999 = vpop.f32.mrb[0].mxu0
        %v2000 = vadd.f32 0.0, %v1999
        %v2001 = vpop.f32.mrb[0].mxu0
        %v2002 = vpop.f32.mrb[0].mxu0
        %v2003 = vadd.f32 0.0, %v2002
        %v2004 = vpop.f32.mrb[0].mxu0
        %2005 = vmatprep.mubr.bf16.mxu0 0
        %2006 = vmatmul.mubr.bf16.gmra.mrb[0].mxu0 %v1927
        %v2007 = vpop.f32.mrb[0].mxu0
        %v2008 = vadd.f32 0.0, %v2007
        %v2009 = vpop.f32.mrb[0].mxu0
        %v2010 = vpop.f32.mrb[0].mxu0
        %v2011 = vadd.f32 0.0, %v2010
        %v2012 = vpop.f32.mrb[0].mxu0
        %2013 = vmatprep.mubr.bf16.mxu0 0
        %2014 = vmatmul.mubr.bf16.gmra.mrb[0].mxu0 %v1930
        %v2015 = vpop.f32.mrb[0].mxu0
        %v2016 = vadd.f32 0.0, %v2015
        %v2017 = vpop.f32.mrb[0].mxu0
        %v2018 = vpop.f32.mrb[0].mxu0
        %v2019 = vadd.f32 0.0, %v2018
        %v2020 = vpop.f32.mrb[0].mxu0
        %2021 = vmatprep.mubr.bf16.mxu0 0
        %2022 = vmatmul.mubr.bf16.gmra.mrb[0].mxu0 %v1933
        %v2023 = vpop.f32.mrb[0].mxu0
        %v2024 = vadd.f32 0.0, %v2023
        %v2025 = vpop.f32.mrb[0].mxu0
        %v2026 = vpop.f32.mrb[0].mxu0
        %v2027 = vadd.f32 0.0, %v2026
        %v2028 = vpop.f32.mrb[0].mxu0
        %2029 = vmatprep.mubr.bf16.mxu0 0
        %2030 = vmatmul.mubr.bf16.gmra.mrb[0].mxu0 %v1936
        %v2031 = vpop.f32.mrb[0].mxu0
        %v2032 = vadd.f32 0.0, %v2031
        %v2033 = vpop.f32.mrb[0].mxu0
        %v2034 = vpop.f32.mrb[0].mxu0
        %v2035 = vadd.f32 0.0, %v2034
        %v2036 = vpop.f32.mrb[0].mxu0
        %2037 = vdwg.mxu0
        %v2038 = vadd.f32 %v1874, %v1976
        %v2039 = vadd.f32 %v1875, %v1979
        %v2040 = vadd.f32 %v1876, %v1984
        %v2041 = vadd.f32 %v1877, %v1987
        %v2042 = vadd.f32 %v1878, %v1992
        %v2043 = vadd.f32 %v1879, %v1995
        %v2044 = vadd.f32 %v1880, %v2000
        %v2045 = vadd.f32 %v1881, %v2003
        %v2046 = vadd.f32 %v1882, %v2008
        %v2047 = vadd.f32 %v1883, %v2011
        %v2048 = vadd.f32 %v1884, %v2016
        %v2049 = vadd.f32 %v1885, %v2019
        %v2050 = vadd.f32 %v1886, %v2024
        %v2051 = vadd.f32 %v1887, %v2027
        %v2052 = vadd.f32 %v1888, %v2032
        %v2053 = vadd.f32 %v1889, %v2035
        %v2054 = vld [vmem:[#allocation7] sm:$0x1]
        %v2056 = vlaneseq
        %v2057 = vshrl.u32 %v2056, 7
        %v2058 = vsub.s32 0, %v2057
        %v2059 = vrot.slane %v2054, %v2058
        %v2061 = vadd.f32 %v2038, %v2059
        %v2062 = vadd.f32 %v2039, %v2059
        %v2063 = vadd.f32 %v2040, %v2059
        %v2064 = vadd.f32 %v2041, %v2059
        %v2065 = vadd.f32 %v2042, %v2059
        %v2066 = vadd.f32 %v2043, %v2059
        %v2067 = vadd.f32 %v2044, %v2059
        %v2068 = vadd.f32 %v2045, %v2059
        %v2069 = vadd.f32 %v2046, %v2059
        %v2070 = vadd.f32 %v2047, %v2059
        %v2071 = vadd.f32 %v2048, %v2059
        %v2072 = vadd.f32 %v2049, %v2059
        %v2073 = vadd.f32 %v2050, %v2059
        %v2074 = vadd.f32 %v2051, %v2059
        %v2075 = vadd.f32 %v2052, %v2059
        %v2076 = vadd.f32 %v2053, %v2059
        %v2077 = vmax.f32 %v2061, 0.0
        %v2078 = vmax.f32 %v2062, 0.0
        %v2079 = vmax.f32 %v2063, 0.0
        %v2080 = vmax.f32 %v2064, 0.0
        %v2081 = vmax.f32 %v2065, 0.0
        %v2082 = vmax.f32 %v2066, 0.0
        %v2083 = vmax.f32 %v2067, 0.0
        %v2084 = vmax.f32 %v2068, 0.0
        %v2085 = vmax.f32 %v2069, 0.0
        %v2086 = vmax.f32 %v2070, 0.0
        %v2087 = vmax.f32 %v2071, 0.0
        %v2088 = vmax.f32 %v2072, 0.0
        %v2089 = vmax.f32 %v2073, 0.0
        %v2090 = vmax.f32 %v2074, 0.0
        %v2091 = vmax.f32 %v2075, 0.0
        %v2092 = vmax.f32 %v2076, 0.0
        %v2093 = vld [vmem:[#allocation8] sm:$0xf]
        %v2094 = vpack.c.bf16 %v2078, %v2077
        %v2095 = vpack.c.bf16 %v2080, %v2079
        %v2096 = vpack.c.bf16 %v2082, %v2081
        %v2097 = vpack.c.bf16 %v2084, %v2083
        %v2098 = vpack.c.bf16 %v2086, %v2085
        %v2099 = vpack.c.bf16 %v2088, %v2087
        %v2100 = vpack.c.bf16 %v2090, %v2089
        %v2101 = vpack.c.bf16 %v2092, %v2091
        %v2102 = vld [vmem:[#allocation10] sm:$0xff]
        %2104 = vset.pattern.permute.xlu0 0
        %2105 = vperm.xlu0 %2104, %v2102
        %v2106 = vpop.permute.xlu0 %2105
        %2108 = vmatprep.subr.bf16.mxu0 0
        %2109 = vmatpush1.bf16.xpose.msra.mxu0 %v2094
        %2110 = vmatprep.subr.bf16.mxu0 0
        %2111 = vmatpush1.bf16.xpose.msra.mxu0 %v2095
        %2112 = vmatprep.subr.bf16.mxu0 0
        %2113 = vmatpush1.bf16.xpose.msra.mxu0 %v2096
        %2114 = vmatprep.subr.bf16.mxu0 0
        %2115 = vmatpush1.bf16.xpose.msra.mxu0 %v2097
        %2116 = vmatprep.subr.bf16.mxu0 0
        %2117 = vmatpush1.bf16.xpose.msra.mxu0 %v2098
        %2118 = vmatprep.subr.bf16.mxu0 0
        %2119 = vmatpush1.bf16.xpose.msra.mxu0 %v2099
        %2120 = vmatprep.subr.bf16.mxu0 0
        %2121 = vmatpush1.bf16.xpose.msra.mxu0 %v2100
        %2122 = vmatprep.subr.bf16.mxu0 0
        %2123 = vmatpush1.bf16.xpose.msra.mxu0 %v2101
        %2124 = vmatprep.subr.bf16.mxu0 0
        %2125 = vmatpush1.bf16.xpose.msra.mxu0 0
        %2126 = vmatprep.subr.bf16.mxu0 0
        %2127 = vmatpush1.bf16.xpose.msra.mxu0 0
        %2128 = vmatprep.subr.bf16.mxu0 0
        %2129 = vmatpush1.bf16.xpose.msra.mxu0 0
        %2130 = vmatprep.subr.bf16.mxu0 0
        %2131 = vmatpush1.bf16.xpose.msra.mxu0 0
        %2132 = vmatprep.subr.bf16.mxu0 0
        %2133 = vmatpush1.bf16.xpose.msra.mxu0 0
        %2134 = vmatprep.subr.bf16.mxu0 0
        %2135 = vmatpush1.bf16.xpose.msra.mxu0 0
        %2136 = vmatprep.subr.bf16.mxu0 0
        %2137 = vmatpush1.bf16.xpose.msra.mxu0 0
        %2138 = vmatprep.subr.bf16.mxu0 0
        %2139 = vmatpush1.bf16.xpose.msra.mxu0 0
        %2140 = vmatprep.mubr.bf16.mxu0 0
        %2141 = vmatmul.mubr.bf16.gmra.mrb[0].mxu0 %v2093
        %v2142 = vpop.f32.mrb[0].mxu0
        %v2143 = vadd.f32 %v2106, %v2142
        %v2144 = vpop.f32.mrb[0].mxu0
        %v2145 = vpop.f32.mrb[0].mxu0
        %v2146 = vpop.f32.mrb[0].mxu0
        %2147 = vdwg.mxu0
        %2148 = vst [vmem:[%s294] sm:$0xff] %v2143
        %s2149 = sand.u32 %s142, 1
        %s2150 = scalar_lea.sflag [#allocation4], %s2149
        %s2151 = sand.u32 %s142, 1
        %s2152 = smul.addr %s2151, 8
        %s2153 = scalar_lea.vmem [#allocation11], %s2152
        // Predicated region
        $region61: #{tpu_custom_call.1} parent=39 // pred_check
          %p2154 = pneg %p152
        $region62: #{tpu_custom_call.1} parent=39 // pred_check_branch
          %2156 = sbr.rel (%p2154) target = $region64
        $region63: #{tpu_custom_call.1} parent=39 // pred_region
          %s2158 = ssub.s32 128, 128
          %2159 = vsyncadd %s2150, %s2158
          %s2160 = smul.addr %s24, 128
          %s2161 = scalar_lea.hbm %s5, %s2160
          %s2163 = sshll.u32 %s2153, 4
          %s2164 = int_to_ptr.vmem [resolvable:$true] %s2163
          %2166 = dma.vmem_to_hbm [thread:$0]  %s2164, 128, %s2161, %s2150
        $region64: #{tpu_custom_call.1} parent=39 // pred_fallthru
          _
      $region40: #{tpu_custom_call.1} parent=5 // pred_fallthru
        _
      %p2167 = scmp.le.s32.totalorder 2, %s19
      // Predicated region
      $region65: #{tpu_custom_call.1} parent=5 // pred_check
        %p2168 = pneg %p2167
      $region66: #{tpu_custom_call.1} parent=5 // pred_check_branch
        %2170 = sbr.rel (%p2168) target = $region68
      $region67: #{tpu_custom_call.1} parent=5 // pred_region
        %s2171 = ssub.s32 %s19, 2
        // Predicated region
        $region69: #{tpu_custom_call.1} parent=67 // pred_check
          %p2172 = pneg %p158
        $region70: #{tpu_custom_call.1} parent=67 // pred_check_branch
          %2174 = sbr.rel (%p2172) target = $region72
        $region71: #{tpu_custom_call.1} parent=67 // pred_region
          %s2175 = sand.u32 %s143, 1
          %s2176 = scalar_lea.sflag [#allocation4], %s2175
          %s2177 = sand.u32 %s143, 1
          %s2178 = smul.addr %s2177, 8
          %s2179 = scalar_lea.vmem [#allocation11], %s2178
          %2180 = dma.done %s2176, 128
        $region72: #{tpu_custom_call.1} parent=67 // pred_fallthru
          _
      $region68: #{tpu_custom_call.1} parent=5 // pred_fallthru
        _
    $region6: #{tpu_custom_call.1} parent=1 // loop_footer
      %s23 = sadd.s32 1, %s19
    $region7: #{tpu_custom_call.1} parent=1 // loop_footer_branch
      %18 = sbr.rel target = $region3
    $region8: #{tpu_custom_call.1} parent=1 // loop_exit
      _
    %2181 = vsyncpa [#allocation3], 1
    %s2182 = scalar_lea.sflag [#allocation3], 1
    %2183 = vsyncpa %s2182, 1
    %2184 = vsyncpa [#allocation6], 1
    %2185 = vsyncpa [#allocation9], 1
    %2186 = vsyncpa [#allocation4], 1
    %s2187 = scalar_lea.sflag [#allocation4], 1
    %2188 = vsyncpa %s2187, 1

</llo_original>
